<compile_context>
chip_gen: v7x
topology: tpu7x:2x2x1
jax: 0.10.0
libtpu: 0.0.40
codegen_flags: <defaults>
</compile_context>

<pallas_src>
import functools

import jax
import jax.numpy as jnp
from jax.experimental import pallas as pl
from jax.experimental.pallas import tpu as pltpu


def _round_up(x, m):
    return (x + m - 1) // m * m


def _pick_th(hout, wout, max_tile_rows=1024):
    """Largest divisor of Hout giving <= max_tile_rows output rows per tile,
    preferring >=2 H tiles so the pipeline has stages beyond the batch dim."""
    divs = [d for d in range(1, hout + 1)
            if hout % d == 0 and d * wout <= max_tile_rows]
    if not divs:
        return 1
    proper = [d for d in divs if d < hout]
    return max(proper) if proper else max(divs)


# ----------------------------- Pallas kernel -------------------------------

def _conv_bn_relu_kernel(x_ref, w_ref, b_ref, o_ref, *, kh, kw, stride,
                         dilation, th, wout):
    # x_ref: (1, H_pad, W_pad, Cin) bf16  full padded image, VMEM-resident
    #        across the (o, h) grid axes (index_map pinned to block n).
    # w_ref: (kh*kw, Cin, TO)       bf16  BN scale already folded in, resident
    #        across the innermost h axis.
    # b_ref: (1, TO)                f32   folded BN bias.
    # o_ref: (1, TH, Wout, TO)      bf16  one output tile (lane-dense TO).
    h = pl.program_id(2)
    th_in = (th - 1) * stride + (kh - 1) * dilation + 1   # rows incl. halo
    row0 = h * (th * stride)          # first padded-input row of this H tile

    # One dynamic row-band load per step; all per-tap slicing below is static
    # and stays in vregs.
    xband = x_ref[0, pl.ds(row0, th_in), :, :]            # (th_in, W_pad, Cin)

    acc = None                        # vreg-resident f32 accumulator
    for i in range(kh):               # unrolled kh*kw tap loop
        for j in range(kw):
            r0 = i * dilation
            c0 = j * dilation
            xs = xband[r0: r0 + (th - 1) * stride + 1: stride,
                       c0: c0 + (wout - 1) * stride + 1: stride, :]
            xs = xs.reshape(th * wout, -1)                # (M, Cin) bf16
            d = jnp.dot(xs, w_ref[i * kw + j],
                        preferred_element_type=jnp.float32)
            acc = d if acc is None else acc + d           # no VMEM round-trip
    y = jnp.maximum(acc + b_ref[...], 0.0)                # bias + ReLU
    o_ref[...] = y.reshape(1, th, wout, -1).astype(o_ref.dtype)  # single store


# ------------------------------- wrapper ------------------------------------

def basic_conv2d(x_nchw, conv_weight, bn_gamma, bn_beta, bn_mean, bn_var,
                 *, stride=1, padding=0, dilation=1, eps=1e-5):
    """x_nchw: [N, Cin, H, W] f32. conv_weight: [O, Cin, kh, kw] f32.
    Returns NCHW bf16 (conv + folded eval-mode BN + ReLU)."""
    O, Cin, kh, kw = conv_weight.shape
    N, _, H, W = x_nchw.shape
    Hout = (H + 2 * padding - dilation * (kh - 1) - 1) // stride + 1
    Wout = (W + 2 * padding - dilation * (kw - 1) - 1) // stride + 1

    O_pad = _round_up(O, 128)                 # lane-dense output / MXU columns
    # 256-wide O tiles feed the full 2x256x256 MXU on v6e/v7x; 128 is already
    # optimal on v5e (4x128x128) and is what small layers get anyway.
    TO = 256 if O_pad % 256 == 0 else 128
    TH = _pick_th(Hout, Wout)
    KK = kh * kw * Cin

    # Fold eval-mode BN into per-channel scale/bias; fold the scale into the
    # conv weights so the kernel epilogue is only bias + ReLU.
    scale = (bn_gamma / jnp.sqrt(bn_var + eps)).astype(jnp.float32)
    bias = (bn_beta - bn_mean * scale).astype(jnp.float32)
    w = conv_weight.astype(jnp.float32) * scale[:, None, None, None]
    w = jnp.transpose(w, (2, 3, 1, 0)).reshape(kh * kw, Cin, O)  # (tap, Cin, O)
    w = jnp.pad(w, ((0, 0), (0, 0), (0, O_pad - O))).astype(jnp.bfloat16)
    bias_p = jnp.pad(bias, (0, O_pad - O)).reshape(1, O_pad)

    # NHWC, spatially zero-padded, streamed as bf16 (halves HBM traffic).
    x_nhwc = jnp.transpose(x_nchw, (0, 2, 3, 1))
    x_pad = jnp.pad(x_nhwc, ((0, 0), (padding, padding),
                             (padding, padding), (0, 0))).astype(jnp.bfloat16)
    H_pad, W_pad = x_pad.shape[1], x_pad.shape[2]

    kernel = functools.partial(_conv_bn_relu_kernel, kh=kh, kw=kw,
                               stride=stride, dilation=dilation,
                               th=TH, wout=Wout)

    grid = (N, O_pad // TO, Hout // TH)
    out = pl.pallas_call(
        kernel,
        out_shape=jax.ShapeDtypeStruct((N, Hout, Wout, O_pad), jnp.bfloat16),
        grid_spec=pltpu.PrefetchScalarGridSpec(
            num_scalar_prefetch=0,
            grid=grid,
            in_specs=[
                # Full padded image; same block across (o, h) -> stays resident.
                pl.BlockSpec((1, H_pad, W_pad, Cin),
                             lambda n, o, h: (n, 0, 0, 0)),
                # Folded weights, tiled along O only; resident across h.
                pl.BlockSpec((kh * kw, Cin, TO), lambda n, o, h: (0, 0, o)),
                pl.BlockSpec((1, TO), lambda n, o, h: (0, o)),
            ],
            out_specs=pl.BlockSpec((1, TH, Wout, TO),
                                   lambda n, o, h: (n, h, 0, o)),
        ),
        compiler_params=pltpu.CompilerParams(
            # No reduction axis -> all parallel (shards across 2 TCs on v7x).
            dimension_semantics=("parallel", "parallel", "parallel"),
            # <= ~48 MiB keeps headroom under v7x's 64 MiB physical VMEM;
            # can be raised to 64-100 MiB on v5e/v6e (128 MiB) for bigger tiles.
            vmem_limit_bytes=48 * 1024 * 1024),
    )(x_pad, w, bias_p)

    out = out[..., :O]                          # drop O padding (bf16)
    return jnp.transpose(out, (0, 3, 1, 2))     # back to NCHW (bf16)


# --------------------------------- main --------------------------------------

if __name__ == "__main__":
    # BasicConv2d(in_planes=4, out_planes=8, kernel_size=3, padding=1)
    N, Cin, H, W = 2, 4, 16, 16
    O, kh, kw = 8, 3, 3
    stride, padding, dilation = 1, 1, 1
    eps = 1e-5

    key = jax.random.PRNGKey(0)
    kx, kwkey, kg, kb, km, kv = jax.random.split(key, 6)
    x = jax.random.normal(kx, (N, Cin, H, W), dtype=jnp.float32)
    conv_weight = jax.random.normal(kwkey, (O, Cin, kh, kw),
                                    dtype=jnp.float32) * 0.1

    # Non-trivial eval-mode BatchNorm2d statistics/affine params.
    bn_gamma = jax.random.uniform(kg, (O,), jnp.float32, 0.5, 1.5)
    bn_beta = jax.random.normal(kb, (O,), jnp.float32) * 0.1
    bn_mean = jax.random.normal(km, (O,), jnp.float32) * 0.1
    bn_var = jax.random.uniform(kv, (O,), jnp.float32, 0.5, 1.5)

    out = basic_conv2d(x, conv_weight, bn_gamma, bn_beta, bn_mean, bn_var,
                       stride=stride, padding=padding, dilation=dilation,
                       eps=eps)
    out = jax.block_until_ready(out)
    assert out.shape == (N, O, H, W), out.shape

    # Reference: XLA conv with the SAME bf16 operands, f32 accumulation and a
    # final bf16 quantization, so only accumulation-order differences remain.
    scale = bn_gamma / jnp.sqrt(bn_var + eps)
    bias = bn_beta - bn_mean * scale
    w_folded = (conv_weight * scale[:, None, None, None]).astype(jnp.bfloat16)
    ref = jax.lax.conv_general_dilated(
        x.astype(jnp.bfloat16), w_folded,
        window_strides=(stride, stride),
        padding=((padding, padding), (padding, padding)),
        rhs_dilation=(dilation, dilation),
        dimension_numbers=("NCHW", "OIHW", "NCHW"),
        preferred_element_type=jnp.float32)
    ref = jnp.maximum(ref + bias[None, :, None, None], 0.0)
    ref_q = ref.astype(jnp.bfloat16).astype(jnp.float32)

    out_f32 = out.astype(jnp.float32)
    err = float(jnp.max(jnp.abs(out_f32 - ref_q)))
    assert jnp.allclose(out_f32, ref_q, atol=3e-2, rtol=3e-2), err

    print("KERNEL_OK")
</pallas_src>

<mosaic_0001>
module attributes {stable_mosaic.version = 11 : i64} {
  func.func @_conv_bn_relu_kernel(%arg0: i32, %arg1: i32, %arg2: i32, %arg3: memref<1x18x18x4xbf16, #tpu.memory_space<vmem>>, %arg4: memref<9x4x128xbf16, #tpu.memory_space<vmem>>, %arg5: memref<1x128xf32, #tpu.memory_space<vmem>>, %arg6: memref<1x8x16x128xbf16, #tpu.memory_space<vmem>>) attributes {dimension_semantics = [#tpu.dimension_semantics<parallel>, #tpu.dimension_semantics<parallel>, #tpu.dimension_semantics<parallel>], iteration_bounds = array<i64: 2, 1, 2>, scalar_prefetch = 0 : i64, scratch_operands = 0 : i64, tpu.core_type = #tpu.core_type<tc>, window_params = [{transform_indices = @transform_0, window_bounds = array<i64: 1, 18, 18, 4>}, {transform_indices = @transform_1, window_bounds = array<i64: 9, 4, 128>}, {transform_indices = @transform_2, window_bounds = array<i64: 1, 128>}, {transform_indices = @transform_3, window_bounds = array<i64: 1, 8, 16, 128>}]} {
    %c8_i32 = arith.constant 8 : i32
    %0 = arith.muli %arg2, %c8_i32 : i32
    %c0 = arith.constant 0 : index
    %1 = arith.index_cast %0 : i32 to index
    %c0_0 = arith.constant 0 : index
    %c0_1 = arith.constant 0 : index
    %2 = vector.load %arg3[%c0, %1, %c0_0, %c0_1] : memref<1x18x18x4xbf16, #tpu.memory_space<vmem>>, vector<1x10x18x4xbf16>
    %3 = vector.shape_cast %2 : vector<1x10x18x4xbf16> to vector<10x18x4xbf16>
    %4 = vector.extract_strided_slice %3 {offsets = [0, 0, 0], sizes = [8, 16, 4], strides = [1, 1, 1]} : vector<10x18x4xbf16> to vector<8x16x4xbf16>
    %5 = vector.shape_cast %4 : vector<8x16x4xbf16> to vector<128x4xbf16>
    %c0_2 = arith.constant 0 : index
    %c0_3 = arith.constant 0 : index
    %c0_4 = arith.constant 0 : index
    %6 = vector.load %arg4[%c0_2, %c0_3, %c0_4] : memref<9x4x128xbf16, #tpu.memory_space<vmem>>, vector<1x4x128xbf16>
    %7 = vector.shape_cast %6 : vector<1x4x128xbf16> to vector<4x128xbf16>
    %cst = arith.constant dense<0.000000e+00> : vector<128x128xf32>
    %8 = tpu.matmul %5, %7, %cst {dimension_numbers = #tpu.dot_dimension_numbers<[1], [0], [0], [1], [0, 0, 1, 1], [], []>} : vector<128x4xbf16>, vector<4x128xbf16>, vector<128x128xf32> -> vector<128x128xf32>
    %9 = vector.extract_strided_slice %3 {offsets = [0, 1, 0], sizes = [8, 16, 4], strides = [1, 1, 1]} : vector<10x18x4xbf16> to vector<8x16x4xbf16>
    %10 = vector.shape_cast %9 : vector<8x16x4xbf16> to vector<128x4xbf16>
    %c1 = arith.constant 1 : index
    %c0_5 = arith.constant 0 : index
    %c0_6 = arith.constant 0 : index
    %11 = vector.load %arg4[%c1, %c0_5, %c0_6] : memref<9x4x128xbf16, #tpu.memory_space<vmem>>, vector<1x4x128xbf16>
    %12 = vector.shape_cast %11 : vector<1x4x128xbf16> to vector<4x128xbf16>
    %cst_7 = arith.constant dense<0.000000e+00> : vector<128x128xf32>
    %13 = tpu.matmul %10, %12, %cst_7 {dimension_numbers = #tpu.dot_dimension_numbers<[1], [0], [0], [1], [0, 0, 1, 1], [], []>} : vector<128x4xbf16>, vector<4x128xbf16>, vector<128x128xf32> -> vector<128x128xf32>
    %14 = arith.addf %8, %13 : vector<128x128xf32>
    %15 = vector.extract_strided_slice %3 {offsets = [0, 2, 0], sizes = [8, 16, 4], strides = [1, 1, 1]} : vector<10x18x4xbf16> to vector<8x16x4xbf16>
    %16 = vector.shape_cast %15 : vector<8x16x4xbf16> to vector<128x4xbf16>
    %c2 = arith.constant 2 : index
    %c0_8 = arith.constant 0 : index
    %c0_9 = arith.constant 0 : index
    %17 = vector.load %arg4[%c2, %c0_8, %c0_9] : memref<9x4x128xbf16, #tpu.memory_space<vmem>>, vector<1x4x128xbf16>
    %18 = vector.shape_cast %17 : vector<1x4x128xbf16> to vector<4x128xbf16>
    %cst_10 = arith.constant dense<0.000000e+00> : vector<128x128xf32>
    %19 = tpu.matmul %16, %18, %cst_10 {dimension_numbers = #tpu.dot_dimension_numbers<[1], [0], [0], [1], [0, 0, 1, 1], [], []>} : vector<128x4xbf16>, vector<4x128xbf16>, vector<128x128xf32> -> vector<128x128xf32>
    %20 = arith.addf %14, %19 : vector<128x128xf32>
    %21 = vector.extract_strided_slice %3 {offsets = [1, 0, 0], sizes = [8, 16, 4], strides = [1, 1, 1]} : vector<10x18x4xbf16> to vector<8x16x4xbf16>
    %22 = vector.shape_cast %21 : vector<8x16x4xbf16> to vector<128x4xbf16>
    %c3 = arith.constant 3 : index
    %c0_11 = arith.constant 0 : index
    %c0_12 = arith.constant 0 : index
    %23 = vector.load %arg4[%c3, %c0_11, %c0_12] : memref<9x4x128xbf16, #tpu.memory_space<vmem>>, vector<1x4x128xbf16>
    %24 = vector.shape_cast %23 : vector<1x4x128xbf16> to vector<4x128xbf16>
    %cst_13 = arith.constant dense<0.000000e+00> : vector<128x128xf32>
    %25 = tpu.matmul %22, %24, %cst_13 {dimension_numbers = #tpu.dot_dimension_numbers<[1], [0], [0], [1], [0, 0, 1, 1], [], []>} : vector<128x4xbf16>, vector<4x128xbf16>, vector<128x128xf32> -> vector<128x128xf32>
    %26 = arith.addf %20, %25 : vector<128x128xf32>
    %27 = vector.extract_strided_slice %3 {offsets = [1, 1, 0], sizes = [8, 16, 4], strides = [1, 1, 1]} : vector<10x18x4xbf16> to vector<8x16x4xbf16>
    %28 = vector.shape_cast %27 : vector<8x16x4xbf16> to vector<128x4xbf16>
    %c4 = arith.constant 4 : index
    %c0_14 = arith.constant 0 : index
    %c0_15 = arith.constant 0 : index
    %29 = vector.load %arg4[%c4, %c0_14, %c0_15] : memref<9x4x128xbf16, #tpu.memory_space<vmem>>, vector<1x4x128xbf16>
    %30 = vector.shape_cast %29 : vector<1x4x128xbf16> to vector<4x128xbf16>
    %cst_16 = arith.constant dense<0.000000e+00> : vector<128x128xf32>
    %31 = tpu.matmul %28, %30, %cst_16 {dimension_numbers = #tpu.dot_dimension_numbers<[1], [0], [0], [1], [0, 0, 1, 1], [], []>} : vector<128x4xbf16>, vector<4x128xbf16>, vector<128x128xf32> -> vector<128x128xf32>
    %32 = arith.addf %26, %31 : vector<128x128xf32>
    %33 = vector.extract_strided_slice %3 {offsets = [1, 2, 0], sizes = [8, 16, 4], strides = [1, 1, 1]} : vector<10x18x4xbf16> to vector<8x16x4xbf16>
    %34 = vector.shape_cast %33 : vector<8x16x4xbf16> to vector<128x4xbf16>
    %c5 = arith.constant 5 : index
    %c0_17 = arith.constant 0 : index
    %c0_18 = arith.constant 0 : index
    %35 = vector.load %arg4[%c5, %c0_17, %c0_18] : memref<9x4x128xbf16, #tpu.memory_space<vmem>>, vector<1x4x128xbf16>
    %36 = vector.shape_cast %35 : vector<1x4x128xbf16> to vector<4x128xbf16>
    %cst_19 = arith.constant dense<0.000000e+00> : vector<128x128xf32>
    %37 = tpu.matmul %34, %36, %cst_19 {dimension_numbers = #tpu.dot_dimension_numbers<[1], [0], [0], [1], [0, 0, 1, 1], [], []>} : vector<128x4xbf16>, vector<4x128xbf16>, vector<128x128xf32> -> vector<128x128xf32>
    %38 = arith.addf %32, %37 : vector<128x128xf32>
    %39 = vector.extract_strided_slice %3 {offsets = [2, 0, 0], sizes = [8, 16, 4], strides = [1, 1, 1]} : vector<10x18x4xbf16> to vector<8x16x4xbf16>
    %40 = vector.shape_cast %39 : vector<8x16x4xbf16> to vector<128x4xbf16>
    %c6 = arith.constant 6 : index
    %c0_20 = arith.constant 0 : index
    %c0_21 = arith.constant 0 : index
    %41 = vector.load %arg4[%c6, %c0_20, %c0_21] : memref<9x4x128xbf16, #tpu.memory_space<vmem>>, vector<1x4x128xbf16>
    %42 = vector.shape_cast %41 : vector<1x4x128xbf16> to vector<4x128xbf16>
    %cst_22 = arith.constant dense<0.000000e+00> : vector<128x128xf32>
    %43 = tpu.matmul %40, %42, %cst_22 {dimension_numbers = #tpu.dot_dimension_numbers<[1], [0], [0], [1], [0, 0, 1, 1], [], []>} : vector<128x4xbf16>, vector<4x128xbf16>, vector<128x128xf32> -> vector<128x128xf32>
    %44 = arith.addf %38, %43 : vector<128x128xf32>
    %45 = vector.extract_strided_slice %3 {offsets = [2, 1, 0], sizes = [8, 16, 4], strides = [1, 1, 1]} : vector<10x18x4xbf16> to vector<8x16x4xbf16>
    %46 = vector.shape_cast %45 : vector<8x16x4xbf16> to vector<128x4xbf16>
    %c7 = arith.constant 7 : index
    %c0_23 = arith.constant 0 : index
    %c0_24 = arith.constant 0 : index
    %47 = vector.load %arg4[%c7, %c0_23, %c0_24] : memref<9x4x128xbf16, #tpu.memory_space<vmem>>, vector<1x4x128xbf16>
    %48 = vector.shape_cast %47 : vector<1x4x128xbf16> to vector<4x128xbf16>
    %cst_25 = arith.constant dense<0.000000e+00> : vector<128x128xf32>
    %49 = tpu.matmul %46, %48, %cst_25 {dimension_numbers = #tpu.dot_dimension_numbers<[1], [0], [0], [1], [0, 0, 1, 1], [], []>} : vector<128x4xbf16>, vector<4x128xbf16>, vector<128x128xf32> -> vector<128x128xf32>
    %50 = arith.addf %44, %49 : vector<128x128xf32>
    %51 = vector.extract_strided_slice %3 {offsets = [2, 2, 0], sizes = [8, 16, 4], strides = [1, 1, 1]} : vector<10x18x4xbf16> to vector<8x16x4xbf16>
    %52 = vector.shape_cast %51 : vector<8x16x4xbf16> to vector<128x4xbf16>
    %c8 = arith.constant 8 : index
    %c0_26 = arith.constant 0 : index
    %c0_27 = arith.constant 0 : index
    %53 = vector.load %arg4[%c8, %c0_26, %c0_27] : memref<9x4x128xbf16, #tpu.memory_space<vmem>>, vector<1x4x128xbf16>
    %54 = vector.shape_cast %53 : vector<1x4x128xbf16> to vector<4x128xbf16>
    %cst_28 = arith.constant dense<0.000000e+00> : vector<128x128xf32>
    %55 = tpu.matmul %52, %54, %cst_28 {dimension_numbers = #tpu.dot_dimension_numbers<[1], [0], [0], [1], [0, 0, 1, 1], [], []>} : vector<128x4xbf16>, vector<4x128xbf16>, vector<128x128xf32> -> vector<128x128xf32>
    %56 = arith.addf %50, %55 : vector<128x128xf32>
    %c0_29 = arith.constant 0 : index
    %c0_30 = arith.constant 0 : index
    %57 = vector.load %arg5[%c0_29, %c0_30] : memref<1x128xf32, #tpu.memory_space<vmem>>, vector<1x128xf32>
    %58 = vector.broadcast %57 : vector<1x128xf32> to vector<128x128xf32>
    %59 = arith.addf %56, %58 : vector<128x128xf32>
    %cst_31 = arith.constant 0.000000e+00 : f32
    %60 = vector.broadcast %cst_31 : f32 to vector<128x128xf32>
    %61 = arith.maximumf %59, %60 : vector<128x128xf32>
    %62 = vector.shape_cast %61 : vector<128x128xf32> to vector<1x8x16x128xf32>
    %63 = arith.truncf %62 : vector<1x8x16x128xf32> to vector<1x8x16x128xbf16>
    %c0_32 = arith.constant 0 : index
    %c0_33 = arith.constant 0 : index
    %c0_34 = arith.constant 0 : index
    %c0_35 = arith.constant 0 : index
    %64 = vector.load %arg6[%c0_32, %c0_33, %c0_34, %c0_35] : memref<1x8x16x128xbf16, #tpu.memory_space<vmem>>, vector<1x8x16x128xbf16>
    tpu.vector_store %arg6[%c0_32, %c0_33, %c0_34, %c0_35], %63 {strides = array<i32>} : memref<1x8x16x128xbf16, #tpu.memory_space<vmem>>, vector<1x8x16x128xbf16>,
    return
  }
  func.func @transform_0(%arg0: i32, %arg1: i32, %arg2: i32) -> (i32, i32, i32, i32) {
    %c0_i32 = arith.constant 0 : i32
    %c0_i32_0 = arith.constant 0 : i32
    %c0_i32_1 = arith.constant 0 : i32
    %c0_i32_2 = arith.constant 0 : i32
    return %arg0, %c0_i32, %c0_i32_0, %c0_i32_1 : i32, i32, i32, i32
  }
  func.func @transform_1(%arg0: i32, %arg1: i32, %arg2: i32) -> (i32, i32, i32) {
    %c0_i32 = arith.constant 0 : i32
    %c0_i32_0 = arith.constant 0 : i32
    %c0_i32_1 = arith.constant 0 : i32
    return %c0_i32, %c0_i32_0, %arg1 : i32, i32, i32
  }
  func.func @transform_2(%arg0: i32, %arg1: i32, %arg2: i32) -> (i32, i32) {
    %c0_i32 = arith.constant 0 : i32
    %c0_i32_0 = arith.constant 0 : i32
    return %c0_i32, %arg1 : i32, i32
  }
  func.func @transform_3(%arg0: i32, %arg1: i32, %arg2: i32) -> (i32, i32, i32, i32) {
    %c0_i32 = arith.constant 0 : i32
    %c0_i32_0 = arith.constant 0 : i32
    return %arg0, %arg2, %c0_i32, %arg1 : i32, i32, i32, i32
  }
}

</mosaic_0001>

<llo_original>
// kernel: tpu_custom_call.1
$region0: #{tpu_custom_call.1}
  #allocation0 [shape = 'u32[]', space=smem, size = 0x4, offset = 0x4, fixed_abs, tag = 'smem constant byte address 0x4 - core index']
  #allocation1 [shape = 'u32[144,128]{1,0:T(1,128)}', space=vmem, size = 0x12000, scoped, tag = 'internal scratch']
  %s0 = inlined_call_operand.vmem [shape: bf16[2,18,18,4], index: 0, kind: input, shape index: {}]
  %s1 = inlined_call_operand.vmem [shape: bf16[9,4,128], index: 1, kind: input, shape index: {}]
  %s2 = inlined_call_operand.vmem [shape: f32[1,128], index: 2, kind: input, shape index: {}]
  %s3 = inlined_call_operand.hbm [shape: bf16[2,16,16,128], index: 3, kind: output, shape index: {}]
  %s4 = sld [smem:[#allocation0]]
  $region45: #{tpu_custom_call.1} parent=0
    _
  %s6 = ssub.s32 1, %s4
  %s7 = scalar_select 0, %s6, %s4
  $region1: #{tpu_custom_call.1} parent=0
    #allocation2 [shape = 'u8[65536]{0}', space=vmem, size = 0x10000, scoped, tag = 'output window, operand 0']
    #allocation3 [shape = 's32[2]{0}', space=sflag, size = 0x8, scoped, tag = 'scoped memory for tpu_custom_call.1']
    %8 = vsyncpa [#allocation3], 0
    %s9 = scalar_lea.sflag [#allocation3], 1
    %10 = vsyncpa %s9, 0
    loop: start=0, step=1, limit=6
    $region2: #{tpu_custom_call.1} parent=1 // loop_pre_header
      _
    $region3: #{tpu_custom_call.1} parent=1 // loop_header
      %s12 = sphi 0, %s16
      %p13 = scmp.ge.s32.totalorder %s12, 6
      %s19 = sphi 0, %s38
      %s20 = sphi 0, %s34
      %s21 = sphi 0, %s30
      %s22 = sphi 0, %s19
      %s23 = sphi 0, %s20
      %s24 = sphi 0, %s21
      %s25 = sphi 0, %s22
      %s26 = sphi 0, %s23
      %s27 = sphi 0, %s24
      %s41 = sphi 0, %s43
      %s44 = sphi 0, %s41
      %s45 = sphi 0, %s44
      %s61 = sphi 0, %s45
      %s67 = sphi 0, %s69
      %s70 = sphi 0, %s67
      %s71 = sphi 0, %s70
      %s87 = sphi 0, %s71
      %s93 = sphi 0, %s95
      %s96 = sphi 0, %s93
      %s97 = sphi 0, %s96
      %s113 = sphi 0, %s97
      %s123 = sphi 0, %s125
      %s126 = sphi 0, %s123
      %s127 = sphi 0, %s126
      %s143 = sphi 0, %s127
    $region4: #{tpu_custom_call.1} parent=1 // loop_header_branch
      %15 = sbr.rel (%p13) target = $region8
    $region5: #{tpu_custom_call.1} parent=1 // loop_body
      %s17 = ssub.s32 %s12, 1
      %s18 = ssub.s32 %s12, 2
      %s28 = sadd.s32 1, %s21
      %p29 = scmp.ge.s32.totalorder %s28, 2
      %s30 = scalar_select %p29, 0, %s28
      %s31 = sadd.s32 1, %s20
      %s32 = scalar_select %p29, %s31, %s20
      %p33 = scmp.ge.s32.totalorder %s32, 1
      %s34 = scalar_select %p33, 0, %s32
      %s35 = sadd.s32 1, %s19
      %s36 = scalar_select %p33, %s35, %s19
      %p37 = scmp.ge.s32.totalorder %s36, 2
      %s38 = scalar_select %p37, 0, %s36
      %s39 = ssub.s32 %s19, %s38
      %p40 = scmp.eq.s32.totalorder %s39, 0
      %s42 = sadd.s32 %s41, 1
      %s43 = scalar_select %p40, %s41, %s42
      %p46 = pneg %p40
      %p47 = scmp.eq.s32.totalorder %s12, 3
      %p48 = por %p46, %p47
      %p49 = scmp.ne.s32.totalorder %s41, %s44
      %p50 = scmp.eq.s32.totalorder %s12, 0
      %p51 = por %p49, %p50
      %p52 = scmp.ne.s32.totalorder %s41, %s44
      %p53 = scmp.eq.s32.totalorder %s17, 3
      %p54 = por %p52, %p53
      %p55 = scmp.ne.s32.totalorder %s44, %s45
      %p56 = scmp.eq.s32.totalorder %s17, 0
      %p57 = por %p55, %p56
      %p58 = scmp.ne.s32.totalorder %s44, %s45
      %p59 = scmp.eq.s32.totalorder %s18, 3
      %p60 = por %p58, %p59
      %p62 = scmp.ne.s32.totalorder %s45, %s61
      %p63 = scmp.eq.s32.totalorder %s18, 0
      %p64 = por %p62, %p63
      %s65 = ssub.s32 %s20, %s34
      %p66 = scmp.eq.s32.totalorder %s65, 0
      %s68 = sadd.s32 %s67, 1
      %s69 = scalar_select %p66, %s67, %s68
      %p72 = pneg %p66
      %p73 = scmp.eq.s32.totalorder %s12, 3
      %p74 = por %p72, %p73
      %p75 = scmp.ne.s32.totalorder %s67, %s70
      %p76 = scmp.eq.s32.totalorder %s12, 0
      %p77 = por %p75, %p76
      %p78 = scmp.ne.s32.totalorder %s67, %s70
      %p79 = scmp.eq.s32.totalorder %s17, 3
      %p80 = por %p78, %p79
      %p81 = scmp.ne.s32.totalorder %s70, %s71
      %p82 = scmp.eq.s32.totalorder %s17, 0
      %p83 = por %p81, %p82
      %p84 = scmp.ne.s32.totalorder %s70, %s71
      %p85 = scmp.eq.s32.totalorder %s18, 3
      %p86 = por %p84, %p85
      %p88 = scmp.ne.s32.totalorder %s71, %s87
      %p89 = scmp.eq.s32.totalorder %s18, 0
      %p90 = por %p88, %p89
      %s91 = ssub.s32 %s20, %s34
      %p92 = scmp.eq.s32.totalorder %s91, 0
      %s94 = sadd.s32 %s93, 1
      %s95 = scalar_select %p92, %s93, %s94
      %p98 = pneg %p92
      %p99 = scmp.eq.s32.totalorder %s12, 3
      %p100 = por %p98, %p99
      %p101 = scmp.ne.s32.totalorder %s93, %s96
      %p102 = scmp.eq.s32.totalorder %s12, 0
      %p103 = por %p101, %p102
      %p104 = scmp.ne.s32.totalorder %s93, %s96
      %p105 = scmp.eq.s32.totalorder %s17, 3
      %p106 = por %p104, %p105
      %p107 = scmp.ne.s32.totalorder %s96, %s97
      %p108 = scmp.eq.s32.totalorder %s17, 0
      %p109 = por %p107, %p108
      %p110 = scmp.ne.s32.totalorder %s96, %s97
      %p111 = scmp.eq.s32.totalorder %s18, 3
      %p112 = por %p110, %p111
      %p114 = scmp.ne.s32.totalorder %s97, %s113
      %p115 = scmp.eq.s32.totalorder %s18, 0
      %p116 = por %p114, %p115
      %s117 = ssub.s32 %s19, %s38
      %s118 = ssub.s32 %s21, %s30
      %s119 = sor.u32 %s117, %s118
      %s120 = ssub.s32 %s20, %s34
      %s121 = sor.u32 %s119, %s120
      %p122 = scmp.eq.s32.totalorder %s121, 0
      %s124 = sadd.s32 %s123, 1
      %s125 = scalar_select %p122, %s123, %s124
      %p128 = pneg %p122
      %p129 = scmp.eq.s32.totalorder %s12, 3
      %p130 = por %p128, %p129
      %p131 = scmp.ne.s32.totalorder %s123, %s126
      %p132 = scmp.eq.s32.totalorder %s12, 0
      %p133 = por %p131, %p132
      %p134 = scmp.ne.s32.totalorder %s123, %s126
      %p135 = scmp.eq.s32.totalorder %s17, 3
      %p136 = por %p134, %p135
      %p137 = scmp.ne.s32.totalorder %s126, %s127
      %p138 = scmp.eq.s32.totalorder %s17, 0
      %p139 = por %p137, %p138
      %p140 = scmp.ne.s32.totalorder %s126, %s127
      %p141 = scmp.eq.s32.totalorder %s18, 3
      %p142 = por %p140, %p141
      %p144 = scmp.ne.s32.totalorder %s127, %s143
      %p145 = scmp.eq.s32.totalorder %s18, 0
      %p146 = por %p144, %p145
      %p147 = scmp.le.s32.totalorder 1, %s12
      %p148 = scmp.lt.s32.totalorder %s12, 5
      %p149 = pnand %p147, %p148
      %p150 = pneg %p149
      // Predicated region
      $region9: #{tpu_custom_call.1} parent=5 // pred_check
        _
      $region10: #{tpu_custom_call.1} parent=5 // pred_check_branch
        %152 = sbr.rel (%p149) target = $region12
      $region11: #{tpu_custom_call.1} parent=5 // pred_region
        %s153 = ssub.s32 %s12, 1
        // Predicated region
        $region13: #{tpu_custom_call.1} parent=11 // pred_check
          %p154 = pneg %p83
        $region14: #{tpu_custom_call.1} parent=11 // pred_check_branch
          %156 = sbr.rel (%p154) target = $region16
        $region15: #{tpu_custom_call.1} parent=11 // pred_region
          %p157 = scmp.lt.s32.totalorder %s23, 0
          %s158 = scalar_select %p157, %s23, 0
          %s159 = smul.addr %s158, 2
          %s160 = scalar_lea.vmem %s1, %s159
        $region16: #{tpu_custom_call.1} parent=11 // pred_fallthru
          _
        // Predicated region
        $region17: #{tpu_custom_call.1} parent=11 // pred_check
          %p161 = pneg %p109
        $region18: #{tpu_custom_call.1} parent=11 // pred_check_branch
          %163 = sbr.rel (%p161) target = $region20
        $region19: #{tpu_custom_call.1} parent=11 // pred_region
          %p164 = scmp.lt.s32.totalorder %s23, 0
          %s165 = scalar_select %p164, %s23, 0
          %s166 = scalar_lea.vmem %s2, %s165
        $region20: #{tpu_custom_call.1} parent=11 // pred_fallthru
          _
      $region12: #{tpu_custom_call.1} parent=5 // pred_fallthru
        _
      %p167 = scmp.lt.s32.totalorder %s12, 4
      // Predicated region
      $region21: #{tpu_custom_call.1} parent=5 // pred_check
        %p168 = pneg %p167
      $region22: #{tpu_custom_call.1} parent=5 // pred_check_branch
        %170 = sbr.rel (%p168) target = $region24
      $region23: #{tpu_custom_call.1} parent=5 // pred_region
        // Predicated region
        $region25: #{tpu_custom_call.1} parent=23 // pred_check
          %p171 = pneg %p51
        $region26: #{tpu_custom_call.1} parent=23 // pred_check_branch
          %173 = sbr.rel (%p171) target = $region28
        $region27: #{tpu_custom_call.1} parent=23 // pred_region
          %p174 = scmp.lt.s32.totalorder %s19, 1
          %s175 = scalar_select %p174, %s19, 1
          %s176 = smul.addr %s175, 54
          %s177 = smul.addr %s176, 4
          %s178 = scalar_lea.vmem %s0, %s177
        $region28: #{tpu_custom_call.1} parent=23 // pred_fallthru
          _
      $region24: #{tpu_custom_call.1} parent=5 // pred_fallthru
        _
      %p179 = scmp.le.s32.totalorder 1, %s12
      %p180 = scmp.lt.s32.totalorder %s12, 5
      %p181 = pnand %p179, %p180
      %p182 = pneg %p181
      // Predicated region
      $region29: #{tpu_custom_call.1} parent=5 // pred_check
        _
      $region30: #{tpu_custom_call.1} parent=5 // pred_check_branch
        %184 = sbr.rel (%p181) target = $region32
      $region31: #{tpu_custom_call.1} parent=5 // pred_region
        %s185 = ssub.s32 %s12, 1
        %p186 = scmp.lt.s32.totalorder %s22, 1
        %s187 = scalar_select %p186, %s22, 1
        %s188 = smul.addr %s187, 54
        %s189 = smul.addr %s188, 4
        %s190 = scalar_lea.vmem %s0, %s189
        %p191 = pneg %p57
        %p192 = pneg %p54
        %p193 = scmp.lt.s32.totalorder %s23, 0
        %s194 = scalar_select %p193, %s23, 0
        %s195 = smul.addr %s194, 2
        %s196 = scalar_lea.vmem %s1, %s195
        %p197 = pneg %p83
        %p198 = pneg %p80
        %p199 = scmp.lt.s32.totalorder %s23, 0
        %s200 = scalar_select %p199, %s23, 0
        %s201 = scalar_lea.vmem %s2, %s200
        %p202 = pneg %p109
        %p203 = pneg %p106
        %p204 = pneg %p139
        %p205 = pneg %p136
        %s206 = sand.u32 %s126, 1
        %s207 = scalar_lea.sflag [#allocation3], %s206
        %s208 = sand.u32 %s126, 1
        %s209 = smul.addr %s208, 64
        %s210 = scalar_lea.vmem [#allocation2], %s209
        %p211 = scmp.lt.s32.totalorder %s22, 1
        %s212 = scalar_select %p211, %s22, 1
        %s213 = smul.addr %s212, 54
        %s214 = smul.addr %s213, 4
        %s215 = scalar_lea.vmem %s0, %s214
        %p216 = scmp.lt.s32.totalorder %s23, 0
        %s217 = scalar_select %p216, %s23, 0
        %s218 = smul.addr %s217, 2
        %s219 = scalar_lea.vmem %s1, %s218
        %p220 = scmp.lt.s32.totalorder %s23, 0
        %s221 = scalar_select %p220, %s23, 0
        %s222 = scalar_lea.vmem %s2, %s221
        %s223 = smul.u32 8, %s24
        %s225 = smul.u32 %s24, 8
        %s226 = smul.u32 %s225, 3
        %s227 = smul.addr %s226, 4
        %s228 = scalar_lea.vmem %s215, %s227
        %v229 = vld [vmem:[%s228] sm:$0xf]
        %v230 = vld [vmem:[%s228 + $0x4] sm:$0xf]
        %v231 = vld [vmem:[%s228 + $0x8] sm:$0x1]
        %v232 = vld [vmem:[%s228 + $0xc] sm:$0xf]
        %v233 = vld [vmem:[%s228 + $0x10] sm:$0xf]
        %v234 = vld [vmem:[%s228 + $0x14] sm:$0x1]
        %v235 = vld [vmem:[%s228 + $0x18] sm:$0xf]
        %v236 = vld [vmem:[%s228 + $0x1c] sm:$0xf]
        %v237 = vld [vmem:[%s228 + $0x20] sm:$0x1]
        %v238 = vld [vmem:[%s228 + $0x24] sm:$0xf]
        %v239 = vld [vmem:[%s228 + $0x28] sm:$0xf]
        %v240 = vld [vmem:[%s228 + $0x2c] sm:$0x1]
        %v241 = vld [vmem:[%s228 + $0x30] sm:$0xf]
        %v242 = vld [vmem:[%s228 + $0x34] sm:$0xf]
        %v243 = vld [vmem:[%s228 + $0x38] sm:$0x1]
        %v244 = vld [vmem:[%s228 + $0x3c] sm:$0xf]
        %v245 = vld [vmem:[%s228 + $0x40] sm:$0xf]
        %v246 = vld [vmem:[%s228 + $0x44] sm:$0x1]
        %v247 = vld [vmem:[%s228 + $0x48] sm:$0xf]
        %v248 = vld [vmem:[%s228 + $0x4c] sm:$0xf]
        %v249 = vld [vmem:[%s228 + $0x50] sm:$0x1]
        %v250 = vld [vmem:[%s228 + $0x54] sm:$0xf]
        %v251 = vld [vmem:[%s228 + $0x58] sm:$0xf]
        %v252 = vld [vmem:[%s228 + $0x5c] sm:$0x1]
        %v253 = vld [vmem:[%s228 + $0x60] sm:$0xf]
        %v254 = vld [vmem:[%s228 + $0x64] sm:$0xf]
        %v255 = vld [vmem:[%s228 + $0x68] sm:$0x1]
        %v256 = vld [vmem:[%s228 + $0x6c] sm:$0xf]
        %v257 = vld [vmem:[%s228 + $0x70] sm:$0xf]
        %v258 = vld [vmem:[%s228 + $0x74] sm:$0x1]
        %v259 = vld [vmem:[%s219] sm:$0x3]
        %vm260 = vsmask.f32 3328
        %vm261 = vsmask.f32 7440
        %vm262 = vmor %vm260, %vm261
        %v264 = vshrl.u32 %v229, 16
        %v266 = vrot.slane %v264, 4
        %v267 = vshll.u32 %v229, 16
        %v269 = vrot.slane %v267, 5
        %v270 = vor.u32 %v266, %v269
        %v271 = vrot.slane %v270, 4
        %v273 = vshll.u32 %v230, 16
        %v275 = vrot.slane %v273, 5
        %v276 = vsel %vm262, %v271, %v275
        %v277 = vshrl.u32 %v230, 16
        %v279 = vrot.slane %v277, 4
        %v280 = vor.u32 %v279, %v275
        %v281 = vrot.slane %v280, 4
        %v283 = vshll.u32 %v231, 16
        %v285 = vrot.slane %v283, 5
        %v286 = vsel %vm262, %v281, %v285
        %v288 = vshrl.u32 %v232, 16
        %v290 = vrot.slane %v288, 4
        %v291 = vshll.u32 %v232, 16
        %v293 = vrot.slane %v291, 5
        %v294 = vor.u32 %v290, %v293
        %v295 = vrot.slane %v294, 4
        %v297 = vshll.u32 %v233, 16
        %v299 = vrot.slane %v297, 5
        %v300 = vsel %vm262, %v295, %v299
        %v301 = vshrl.u32 %v233, 16
        %v303 = vrot.slane %v301, 4
        %v304 = vor.u32 %v303, %v299
        %v305 = vrot.slane %v304, 4
        %v307 = vshll.u32 %v234, 16
        %v309 = vrot.slane %v307, 5
        %v310 = vsel %vm262, %v305, %v309
        %v312 = vshrl.u32 %v235, 16
        %v314 = vrot.slane %v312, 4
        %v315 = vshll.u32 %v235, 16
        %v317 = vrot.slane %v315, 5
        %v318 = vor.u32 %v314, %v317
        %v319 = vrot.slane %v318, 4
        %v321 = vshll.u32 %v236, 16
        %v323 = vrot.slane %v321, 5
        %v324 = vsel %vm262, %v319, %v323
        %v325 = vshrl.u32 %v236, 16
        %v327 = vrot.slane %v325, 4
        %v328 = vor.u32 %v327, %v323
        %v329 = vrot.slane %v328, 4
        %v331 = vshll.u32 %v237, 16
        %v333 = vrot.slane %v331, 5
        %v334 = vsel %vm262, %v329, %v333
        %v336 = vshrl.u32 %v238, 16
        %v338 = vrot.slane %v336, 4
        %v339 = vshll.u32 %v238, 16
        %v341 = vrot.slane %v339, 5
        %v342 = vor.u32 %v338, %v341
        %v343 = vrot.slane %v342, 4
        %v345 = vshll.u32 %v239, 16
        %v347 = vrot.slane %v345, 5
        %v348 = vsel %vm262, %v343, %v347
        %v349 = vshrl.u32 %v239, 16
        %v351 = vrot.slane %v349, 4
        %v352 = vor.u32 %v351, %v347
        %v353 = vrot.slane %v352, 4
        %v355 = vshll.u32 %v240, 16
        %v357 = vrot.slane %v355, 5
        %v358 = vsel %vm262, %v353, %v357
        %v360 = vshrl.u32 %v241, 16
        %v362 = vrot.slane %v360, 4
        %v363 = vshll.u32 %v241, 16
        %v365 = vrot.slane %v363, 5
        %v366 = vor.u32 %v362, %v365
        %v367 = vrot.slane %v366, 4
        %v369 = vshll.u32 %v242, 16
        %v371 = vrot.slane %v369, 5
        %v372 = vsel %vm262, %v367, %v371
        %v373 = vshrl.u32 %v242, 16
        %v375 = vrot.slane %v373, 4
        %v376 = vor.u32 %v375, %v371
        %v377 = vrot.slane %v376, 4
        %v379 = vshll.u32 %v243, 16
        %v381 = vrot.slane %v379, 5
        %v382 = vsel %vm262, %v377, %v381
        %v384 = vshrl.u32 %v244, 16
        %v386 = vrot.slane %v384, 4
        %v387 = vshll.u32 %v244, 16
        %v389 = vrot.slane %v387, 5
        %v390 = vor.u32 %v386, %v389
        %v391 = vrot.slane %v390, 4
        %v393 = vshll.u32 %v245, 16
        %v395 = vrot.slane %v393, 5
        %v396 = vsel %vm262, %v391, %v395
        %v397 = vshrl.u32 %v245, 16
        %v399 = vrot.slane %v397, 4
        %v400 = vor.u32 %v399, %v395
        %v401 = vrot.slane %v400, 4
        %v403 = vshll.u32 %v246, 16
        %v405 = vrot.slane %v403, 5
        %v406 = vsel %vm262, %v401, %v405
        %v408 = vshrl.u32 %v247, 16
        %v410 = vrot.slane %v408, 4
        %v411 = vshll.u32 %v247, 16
        %v413 = vrot.slane %v411, 5
        %v414 = vor.u32 %v410, %v413
        %v415 = vrot.slane %v414, 4
        %v417 = vshll.u32 %v248, 16
        %v419 = vrot.slane %v417, 5
        %v420 = vsel %vm262, %v415, %v419
        %v421 = vshrl.u32 %v248, 16
        %v423 = vrot.slane %v421, 4
        %v424 = vor.u32 %v423, %v419
        %v425 = vrot.slane %v424, 4
        %v427 = vshll.u32 %v249, 16
        %v429 = vrot.slane %v427, 5
        %v430 = vsel %vm262, %v425, %v429
        %v432 = vshrl.u32 %v250, 16
        %v434 = vrot.slane %v432, 4
        %v435 = vshll.u32 %v250, 16
        %v437 = vrot.slane %v435, 5
        %v438 = vor.u32 %v434, %v437
        %v439 = vrot.slane %v438, 4
        %v441 = vshll.u32 %v251, 16
        %v443 = vrot.slane %v441, 5
        %v444 = vsel %vm262, %v439, %v443
        %v445 = vshrl.u32 %v251, 16
        %v447 = vrot.slane %v445, 4
        %v448 = vor.u32 %v447, %v443
        %v449 = vrot.slane %v448, 4
        %v451 = vshll.u32 %v252, 16
        %v453 = vrot.slane %v451, 5
        %v454 = vsel %vm262, %v449, %v453
        %s455 = scalar_lea.vmem %s219, 2
        %v456 = vld [vmem:[%s455] sm:$0x3]
        %v457 = vunpack.c.l.b16 %v276
        %v458 = vunpack.c.l.b16 %v286
        %v459 = vunpack.c.l.b16 %v300
        %v460 = vunpack.c.l.b16 %v310
        %v461 = vunpack.c.l.b16 %v324
        %v462 = vunpack.c.l.b16 %v334
        %v463 = vunpack.c.l.b16 %v348
        %v464 = vunpack.c.l.b16 %v358
        %v465 = vunpack.c.l.b16 %v372
        %v466 = vunpack.c.l.b16 %v382
        %v467 = vunpack.c.l.b16 %v396
        %v468 = vunpack.c.l.b16 %v406
        %v469 = vunpack.c.l.b16 %v420
        %v470 = vunpack.c.l.b16 %v430
        %v471 = vunpack.c.l.b16 %v444
        %v472 = vunpack.c.l.b16 %v454
        %v473 = vpack.c.b16 %v458, %v457
        %v474 = vpack.c.b16 %v460, %v459
        %v475 = vpack.c.b16 %v462, %v461
        %v476 = vpack.c.b16 %v464, %v463
        %v477 = vpack.c.b16 %v466, %v465
        %v478 = vpack.c.b16 %v468, %v467
        %v479 = vpack.c.b16 %v470, %v469
        %v480 = vpack.c.b16 %v472, %v471
        %vm481 = vcmask 31744
        %v483 = vsel %vm481, %v473, 0
        %v486 = vsel %vm481, %v474, 0
        %v489 = vsel %vm481, %v475, 0
        %v492 = vsel %vm481, %v476, 0
        %v495 = vsel %vm481, %v477, 0
        %v498 = vsel %vm481, %v478, 0
        %v501 = vsel %vm481, %v479, 0
        %v504 = vsel %vm481, %v480, 0
        %vm506 = vcmask 1041408
        %v508 = vsel %vm506, %v456, 0
        %510 = vmatprep.subr.bf16.mxu0 0
        %511 = vmatpush1.bf16.msra.mxu0 %v508
        %512 = vmatprep.subr.bf16.mxu0 0
        %513 = vmatpush1.bf16.msra.mxu0 0
        %514 = vmatprep.subr.bf16.mxu0 0
        %515 = vmatpush1.bf16.msra.mxu0 0
        %516 = vmatprep.subr.bf16.mxu0 0
        %517 = vmatpush1.bf16.msra.mxu0 0
        %518 = vmatprep.subr.bf16.mxu0 0
        %519 = vmatpush1.bf16.msra.mxu0 0
        %520 = vmatprep.subr.bf16.mxu0 0
        %521 = vmatpush1.bf16.msra.mxu0 0
        %522 = vmatprep.subr.bf16.mxu0 0
        %523 = vmatpush1.bf16.msra.mxu0 0
        %524 = vmatprep.subr.bf16.mxu0 0
        %525 = vmatpush1.bf16.msra.mxu0 0
        %526 = vmatprep.subr.bf16.mxu0 0
        %527 = vmatpush1.bf16.msra.mxu0 0
        %528 = vmatprep.subr.bf16.mxu0 0
        %529 = vmatpush1.bf16.msra.mxu0 0
        %530 = vmatprep.subr.bf16.mxu0 0
        %531 = vmatpush1.bf16.msra.mxu0 0
        %532 = vmatprep.subr.bf16.mxu0 0
        %533 = vmatpush1.bf16.msra.mxu0 0
        %534 = vmatprep.subr.bf16.mxu0 0
        %535 = vmatpush1.bf16.msra.mxu0 0
        %536 = vmatprep.subr.bf16.mxu0 0
        %537 = vmatpush1.bf16.msra.mxu0 0
        %538 = vmatprep.subr.bf16.mxu0 0
        %539 = vmatpush1.bf16.msra.mxu0 0
        %540 = vmatprep.subr.bf16.mxu0 0
        %541 = vmatpush1.bf16.msra.mxu0 0
        %542 = vmatprep.mubr.bf16.mxu0 0
        %543 = vmatmul.mubr.bf16.gmra.mrb[0].mxu0 %v483
        %v544 = vpop.f32.mrb[0].mxu0
        %v545 = vadd.f32 0.0, %v544
        %v546 = vpop.f32.mrb[0].mxu0
        %v547 = vpop.f32.mrb[0].mxu0
        %v548 = vadd.f32 0.0, %v547
        %v549 = vpop.f32.mrb[0].mxu0
        %550 = vmatprep.mubr.bf16.mxu0 0
        %551 = vmatmul.mubr.bf16.gmra.mrb[0].mxu0 %v486
        %v552 = vpop.f32.mrb[0].mxu0
        %v553 = vadd.f32 0.0, %v552
        %v554 = vpop.f32.mrb[0].mxu0
        %v555 = vpop.f32.mrb[0].mxu0
        %v556 = vadd.f32 0.0, %v555
        %v557 = vpop.f32.mrb[0].mxu0
        %558 = vmatprep.mubr.bf16.mxu0 0
        %559 = vmatmul.mubr.bf16.gmra.mrb[0].mxu0 %v489
        %v560 = vpop.f32.mrb[0].mxu0
        %v561 = vadd.f32 0.0, %v560
        %v562 = vpop.f32.mrb[0].mxu0
        %v563 = vpop.f32.mrb[0].mxu0
        %v564 = vadd.f32 0.0, %v563
        %v565 = vpop.f32.mrb[0].mxu0
        %566 = vmatprep.mubr.bf16.mxu0 0
        %567 = vmatmul.mubr.bf16.gmra.mrb[0].mxu0 %v492
        %v568 = vpop.f32.mrb[0].mxu0
        %v569 = vadd.f32 0.0, %v568
        %v570 = vpop.f32.mrb[0].mxu0
        %v571 = vpop.f32.mrb[0].mxu0
        %v572 = vadd.f32 0.0, %v571
        %v573 = vpop.f32.mrb[0].mxu0
        %574 = vmatprep.mubr.bf16.mxu0 0
        %575 = vmatmul.mubr.bf16.gmra.mrb[0].mxu0 %v495
        %v576 = vpop.f32.mrb[0].mxu0
        %v577 = vadd.f32 0.0, %v576
        %v578 = vpop.f32.mrb[0].mxu0
        %v579 = vpop.f32.mrb[0].mxu0
        %v580 = vadd.f32 0.0, %v579
        %v581 = vpop.f32.mrb[0].mxu0
        %582 = vmatprep.mubr.bf16.mxu0 0
        %583 = vmatmul.mubr.bf16.gmra.mrb[0].mxu0 %v498
        %v584 = vpop.f32.mrb[0].mxu0
        %v585 = vadd.f32 0.0, %v584
        %v586 = vpop.f32.mrb[0].mxu0
        %v587 = vpop.f32.mrb[0].mxu0
        %v588 = vadd.f32 0.0, %v587
        %v589 = vpop.f32.mrb[0].mxu0
        %590 = vmatprep.mubr.bf16.mxu0 0
        %591 = vmatmul.mubr.bf16.gmra.mrb[0].mxu0 %v501
        %v592 = vpop.f32.mrb[0].mxu0
        %v593 = vadd.f32 0.0, %v592
        %v594 = vpop.f32.mrb[0].mxu0
        %v595 = vpop.f32.mrb[0].mxu0
        %v596 = vadd.f32 0.0, %v595
        %v597 = vpop.f32.mrb[0].mxu0
        %598 = vmatprep.mubr.bf16.mxu0 0
        %599 = vmatmul.mubr.bf16.gmra.mrb[0].mxu0 %v504
        %v600 = vpop.f32.mrb[0].mxu0
        %v601 = vadd.f32 0.0, %v600
        %v602 = vpop.f32.mrb[0].mxu0
        %v603 = vpop.f32.mrb[0].mxu0
        %v604 = vadd.f32 0.0, %v603
        %v605 = vpop.f32.mrb[0].mxu0
        %606 = vdwg.mxu0
        %v623 = vunpack.c.l.b16 %v229
        %v624 = vunpack.c.l.b16 %v230
        %v625 = vunpack.c.l.b16 %v232
        %v626 = vunpack.c.l.b16 %v233
        %v627 = vunpack.c.l.b16 %v235
        %v628 = vunpack.c.l.b16 %v236
        %v629 = vunpack.c.l.b16 %v238
        %v630 = vunpack.c.l.b16 %v239
        %v631 = vunpack.c.l.b16 %v241
        %v632 = vunpack.c.l.b16 %v242
        %v633 = vunpack.c.l.b16 %v244
        %v634 = vunpack.c.l.b16 %v245
        %v635 = vunpack.c.l.b16 %v247
        %v636 = vunpack.c.l.b16 %v248
        %v637 = vunpack.c.l.b16 %v250
        %v638 = vunpack.c.l.b16 %v251
        %v639 = vpack.c.b16 %v624, %v623
        %v640 = vpack.c.b16 %v626, %v625
        %v641 = vpack.c.b16 %v628, %v627
        %v642 = vpack.c.b16 %v630, %v629
        %v643 = vpack.c.b16 %v632, %v631
        %v644 = vpack.c.b16 %v634, %v633
        %v645 = vpack.c.b16 %v636, %v635
        %v646 = vpack.c.b16 %v638, %v637
        %v648 = vsel %vm481, %v639, 0
        %v651 = vsel %vm481, %v640, 0
        %v654 = vsel %vm481, %v641, 0
        %v657 = vsel %vm481, %v642, 0
        %v660 = vsel %vm481, %v643, 0
        %v663 = vsel %vm481, %v644, 0
        %v666 = vsel %vm481, %v645, 0
        %v669 = vsel %vm481, %v646, 0
        %v672 = vsel %vm506, %v259, 0
        %674 = vmatprep.subr.bf16.mxu0 0
        %675 = vmatpush1.bf16.msra.mxu0 %v672
        %676 = vmatprep.subr.bf16.mxu0 0
        %677 = vmatpush1.bf16.msra.mxu0 0
        %678 = vmatprep.subr.bf16.mxu0 0
        %679 = vmatpush1.bf16.msra.mxu0 0
        %680 = vmatprep.subr.bf16.mxu0 0
        %681 = vmatpush1.bf16.msra.mxu0 0
        %682 = vmatprep.subr.bf16.mxu0 0
        %683 = vmatpush1.bf16.msra.mxu0 0
        %684 = vmatprep.subr.bf16.mxu0 0
        %685 = vmatpush1.bf16.msra.mxu0 0
        %686 = vmatprep.subr.bf16.mxu0 0
        %687 = vmatpush1.bf16.msra.mxu0 0
        %688 = vmatprep.subr.bf16.mxu0 0
        %689 = vmatpush1.bf16.msra.mxu0 0
        %690 = vmatprep.subr.bf16.mxu0 0
        %691 = vmatpush1.bf16.msra.mxu0 0
        %692 = vmatprep.subr.bf16.mxu0 0
        %693 = vmatpush1.bf16.msra.mxu0 0
        %694 = vmatprep.subr.bf16.mxu0 0
        %695 = vmatpush1.bf16.msra.mxu0 0
        %696 = vmatprep.subr.bf16.mxu0 0
        %697 = vmatpush1.bf16.msra.mxu0 0
        %698 = vmatprep.subr.bf16.mxu0 0
        %699 = vmatpush1.bf16.msra.mxu0 0
        %700 = vmatprep.subr.bf16.mxu0 0
        %701 = vmatpush1.bf16.msra.mxu0 0
        %702 = vmatprep.subr.bf16.mxu0 0
        %703 = vmatpush1.bf16.msra.mxu0 0
        %704 = vmatprep.subr.bf16.mxu0 0
        %705 = vmatpush1.bf16.msra.mxu0 0
        %706 = vmatprep.mubr.bf16.mxu0 0
        %707 = vmatmul.mubr.bf16.gmra.mrb[0].mxu0 %v648
        %v708 = vpop.f32.mrb[0].mxu0
        %v709 = vadd.f32 %v545, %v708
        %v710 = vpop.f32.mrb[0].mxu0
        %v711 = vpop.f32.mrb[0].mxu0
        %v712 = vadd.f32 %v548, %v711
        %v713 = vpop.f32.mrb[0].mxu0
        %714 = vmatprep.mubr.bf16.mxu0 0
        %715 = vmatmul.mubr.bf16.gmra.mrb[0].mxu0 %v651
        %v716 = vpop.f32.mrb[0].mxu0
        %v717 = vadd.f32 %v553, %v716
        %v718 = vpop.f32.mrb[0].mxu0
        %v719 = vpop.f32.mrb[0].mxu0
        %v720 = vadd.f32 %v556, %v719
        %v721 = vpop.f32.mrb[0].mxu0
        %722 = vmatprep.mubr.bf16.mxu0 0
        %723 = vmatmul.mubr.bf16.gmra.mrb[0].mxu0 %v654
        %v724 = vpop.f32.mrb[0].mxu0
        %v725 = vadd.f32 %v561, %v724
        %v726 = vpop.f32.mrb[0].mxu0
        %v727 = vpop.f32.mrb[0].mxu0
        %v728 = vadd.f32 %v564, %v727
        %v729 = vpop.f32.mrb[0].mxu0
        %730 = vmatprep.mubr.bf16.mxu0 0
        %731 = vmatmul.mubr.bf16.gmra.mrb[0].mxu0 %v657
        %v732 = vpop.f32.mrb[0].mxu0
        %v733 = vadd.f32 %v569, %v732
        %v734 = vpop.f32.mrb[0].mxu0
        %v735 = vpop.f32.mrb[0].mxu0
        %v736 = vadd.f32 %v572, %v735
        %v737 = vpop.f32.mrb[0].mxu0
        %738 = vmatprep.mubr.bf16.mxu0 0
        %739 = vmatmul.mubr.bf16.gmra.mrb[0].mxu0 %v660
        %v740 = vpop.f32.mrb[0].mxu0
        %v741 = vadd.f32 %v577, %v740
        %v742 = vpop.f32.mrb[0].mxu0
        %v743 = vpop.f32.mrb[0].mxu0
        %v744 = vadd.f32 %v580, %v743
        %v745 = vpop.f32.mrb[0].mxu0
        %746 = vmatprep.mubr.bf16.mxu0 0
        %747 = vmatmul.mubr.bf16.gmra.mrb[0].mxu0 %v663
        %v748 = vpop.f32.mrb[0].mxu0
        %v749 = vadd.f32 %v585, %v748
        %v750 = vpop.f32.mrb[0].mxu0
        %v751 = vpop.f32.mrb[0].mxu0
        %v752 = vadd.f32 %v588, %v751
        %v753 = vpop.f32.mrb[0].mxu0
        %754 = vmatprep.mubr.bf16.mxu0 0
        %755 = vmatmul.mubr.bf16.gmra.mrb[0].mxu0 %v666
        %v756 = vpop.f32.mrb[0].mxu0
        %v757 = vadd.f32 %v593, %v756
        %v758 = vpop.f32.mrb[0].mxu0
        %v759 = vpop.f32.mrb[0].mxu0
        %v760 = vadd.f32 %v596, %v759
        %v761 = vpop.f32.mrb[0].mxu0
        %762 = vmatprep.mubr.bf16.mxu0 0
        %763 = vmatmul.mubr.bf16.gmra.mrb[0].mxu0 %v669
        %v764 = vpop.f32.mrb[0].mxu0
        %v765 = vadd.f32 %v601, %v764
        %v766 = vpop.f32.mrb[0].mxu0
        %v767 = vpop.f32.mrb[0].mxu0
        %v768 = vadd.f32 %v604, %v767
        %v769 = vpop.f32.mrb[0].mxu0
        %770 = vdwg.mxu0
        %vm779 = vcmask 1042432
        %vm780 = vcmask 1046532
        %vm781 = vmor %vm779, %vm780
        %v782 = vrot.slane %v229, 5
        %v783 = vrot.slane %v782, 4
        %v784 = vrot.slane %v230, 5
        %v785 = vsel %vm781, %v783, %v784
        %v786 = vrot.slane %v784, 4
        %v787 = vrot.slane %v231, 5
        %v788 = vsel %vm781, %v786, %v787
        %v789 = vrot.slane %v232, 5
        %v790 = vrot.slane %v789, 4
        %v791 = vrot.slane %v233, 5
        %v792 = vsel %vm781, %v790, %v791
        %v793 = vrot.slane %v791, 4
        %v794 = vrot.slane %v234, 5
        %v795 = vsel %vm781, %v793, %v794
        %v796 = vrot.slane %v235, 5
        %v797 = vrot.slane %v796, 4
        %v798 = vrot.slane %v236, 5
        %v799 = vsel %vm781, %v797, %v798
        %v800 = vrot.slane %v798, 4
        %v801 = vrot.slane %v237, 5
        %v802 = vsel %vm781, %v800, %v801
        %v803 = vrot.slane %v238, 5
        %v804 = vrot.slane %v803, 4
        %v805 = vrot.slane %v239, 5
        %v806 = vsel %vm781, %v804, %v805
        %v807 = vrot.slane %v805, 4
        %v808 = vrot.slane %v240, 5
        %v809 = vsel %vm781, %v807, %v808
        %v810 = vrot.slane %v241, 5
        %v811 = vrot.slane %v810, 4
        %v812 = vrot.slane %v242, 5
        %v813 = vsel %vm781, %v811, %v812
        %v814 = vrot.slane %v812, 4
        %v815 = vrot.slane %v243, 5
        %v816 = vsel %vm781, %v814, %v815
        %v817 = vrot.slane %v244, 5
        %v818 = vrot.slane %v817, 4
        %v819 = vrot.slane %v245, 5
        %v820 = vsel %vm781, %v818, %v819
        %v821 = vrot.slane %v819, 4
        %v822 = vrot.slane %v246, 5
        %v823 = vsel %vm781, %v821, %v822
        %v824 = vrot.slane %v247, 5
        %v825 = vrot.slane %v824, 4
        %v826 = vrot.slane %v248, 5
        %v827 = vsel %vm781, %v825, %v826
        %v828 = vrot.slane %v826, 4
        %v829 = vrot.slane %v249, 5
        %v830 = vsel %vm781, %v828, %v829
        %v831 = vrot.slane %v250, 5
        %v832 = vrot.slane %v831, 4
        %v833 = vrot.slane %v251, 5
        %v834 = vsel %vm781, %v832, %v833
        %v835 = vrot.slane %v833, 4
        %v836 = vrot.slane %v252, 5
        %v837 = vsel %vm781, %v835, %v836
        %s838 = scalar_lea.vmem %s219, 4
        %v839 = vld [vmem:[%s838] sm:$0x3]
        %v840 = vunpack.c.l.b16 %v785
        %v841 = vunpack.c.l.b16 %v788
        %v842 = vunpack.c.l.b16 %v792
        %v843 = vunpack.c.l.b16 %v795
        %v844 = vunpack.c.l.b16 %v799
        %v845 = vunpack.c.l.b16 %v802
        %v846 = vunpack.c.l.b16 %v806
        %v847 = vunpack.c.l.b16 %v809
        %v848 = vunpack.c.l.b16 %v813
        %v849 = vunpack.c.l.b16 %v816
        %v850 = vunpack.c.l.b16 %v820
        %v851 = vunpack.c.l.b16 %v823
        %v852 = vunpack.c.l.b16 %v827
        %v853 = vunpack.c.l.b16 %v830
        %v854 = vunpack.c.l.b16 %v834
        %v855 = vunpack.c.l.b16 %v837
        %v856 = vpack.c.b16 %v841, %v840
        %v857 = vpack.c.b16 %v843, %v842
        %v858 = vpack.c.b16 %v845, %v844
        %v859 = vpack.c.b16 %v847, %v846
        %v860 = vpack.c.b16 %v849, %v848
        %v861 = vpack.c.b16 %v851, %v850
        %v862 = vpack.c.b16 %v853, %v852
        %v863 = vpack.c.b16 %v855, %v854
        %v865 = vsel %vm481, %v856, 0
        %v868 = vsel %vm481, %v857, 0
        %v871 = vsel %vm481, %v858, 0
        %v874 = vsel %vm481, %v859, 0
        %v877 = vsel %vm481, %v860, 0
        %v880 = vsel %vm481, %v861, 0
        %v883 = vsel %vm481, %v862, 0
        %v886 = vsel %vm481, %v863, 0
        %v889 = vsel %vm506, %v839, 0
        %891 = vmatprep.subr.bf16.mxu0 0
        %892 = vmatpush1.bf16.msra.mxu0 %v889
        %893 = vmatprep.subr.bf16.mxu0 0
        %894 = vmatpush1.bf16.msra.mxu0 0
        %895 = vmatprep.subr.bf16.mxu0 0
        %896 = vmatpush1.bf16.msra.mxu0 0
        %897 = vmatprep.subr.bf16.mxu0 0
        %898 = vmatpush1.bf16.msra.mxu0 0
        %899 = vmatprep.subr.bf16.mxu0 0
        %900 = vmatpush1.bf16.msra.mxu0 0
        %901 = vmatprep.subr.bf16.mxu0 0
        %902 = vmatpush1.bf16.msra.mxu0 0
        %903 = vmatprep.subr.bf16.mxu0 0
        %904 = vmatpush1.bf16.msra.mxu0 0
        %905 = vmatprep.subr.bf16.mxu0 0
        %906 = vmatpush1.bf16.msra.mxu0 0
        %907 = vmatprep.subr.bf16.mxu0 0
        %908 = vmatpush1.bf16.msra.mxu0 0
        %909 = vmatprep.subr.bf16.mxu0 0
        %910 = vmatpush1.bf16.msra.mxu0 0
        %911 = vmatprep.subr.bf16.mxu0 0
        %912 = vmatpush1.bf16.msra.mxu0 0
        %913 = vmatprep.subr.bf16.mxu0 0
        %914 = vmatpush1.bf16.msra.mxu0 0
        %915 = vmatprep.subr.bf16.mxu0 0
        %916 = vmatpush1.bf16.msra.mxu0 0
        %917 = vmatprep.subr.bf16.mxu0 0
        %918 = vmatpush1.bf16.msra.mxu0 0
        %919 = vmatprep.subr.bf16.mxu0 0
        %920 = vmatpush1.bf16.msra.mxu0 0
        %921 = vmatprep.subr.bf16.mxu0 0
        %922 = vmatpush1.bf16.msra.mxu0 0
        %923 = vmatprep.mubr.bf16.mxu0 0
        %924 = vmatmul.mubr.bf16.gmra.mrb[0].mxu0 %v865
        %v925 = vpop.f32.mrb[0].mxu0
        %v926 = vadd.f32 0.0, %v925
        %v927 = vpop.f32.mrb[0].mxu0
        %v928 = vpop.f32.mrb[0].mxu0
        %v929 = vadd.f32 0.0, %v928
        %v930 = vpop.f32.mrb[0].mxu0
        %931 = vmatprep.mubr.bf16.mxu0 0
        %932 = vmatmul.mubr.bf16.gmra.mrb[0].mxu0 %v868
        %v933 = vpop.f32.mrb[0].mxu0
        %v934 = vadd.f32 0.0, %v933
        %v935 = vpop.f32.mrb[0].mxu0
        %v936 = vpop.f32.mrb[0].mxu0
        %v937 = vadd.f32 0.0, %v936
        %v938 = vpop.f32.mrb[0].mxu0
        %939 = vmatprep.mubr.bf16.mxu0 0
        %940 = vmatmul.mubr.bf16.gmra.mrb[0].mxu0 %v871
        %v941 = vpop.f32.mrb[0].mxu0
        %v942 = vadd.f32 0.0, %v941
        %v943 = vpop.f32.mrb[0].mxu0
        %v944 = vpop.f32.mrb[0].mxu0
        %v945 = vadd.f32 0.0, %v944
        %v946 = vpop.f32.mrb[0].mxu0
        %947 = vmatprep.mubr.bf16.mxu0 0
        %948 = vmatmul.mubr.bf16.gmra.mrb[0].mxu0 %v874
        %v949 = vpop.f32.mrb[0].mxu0
        %v950 = vadd.f32 0.0, %v949
        %v951 = vpop.f32.mrb[0].mxu0
        %v952 = vpop.f32.mrb[0].mxu0
        %v953 = vadd.f32 0.0, %v952
        %v954 = vpop.f32.mrb[0].mxu0
        %955 = vmatprep.mubr.bf16.mxu0 0
        %956 = vmatmul.mubr.bf16.gmra.mrb[0].mxu0 %v877
        %v957 = vpop.f32.mrb[0].mxu0
        %v958 = vadd.f32 0.0, %v957
        %v959 = vpop.f32.mrb[0].mxu0
        %v960 = vpop.f32.mrb[0].mxu0
        %v961 = vadd.f32 0.0, %v960
        %v962 = vpop.f32.mrb[0].mxu0
        %963 = vmatprep.mubr.bf16.mxu0 0
        %964 = vmatmul.mubr.bf16.gmra.mrb[0].mxu0 %v880
        %v965 = vpop.f32.mrb[0].mxu0
        %v966 = vadd.f32 0.0, %v965
        %v967 = vpop.f32.mrb[0].mxu0
        %v968 = vpop.f32.mrb[0].mxu0
        %v969 = vadd.f32 0.0, %v968
        %v970 = vpop.f32.mrb[0].mxu0
        %971 = vmatprep.mubr.bf16.mxu0 0
        %972 = vmatmul.mubr.bf16.gmra.mrb[0].mxu0 %v883
        %v973 = vpop.f32.mrb[0].mxu0
        %v974 = vadd.f32 0.0, %v973
        %v975 = vpop.f32.mrb[0].mxu0
        %v976 = vpop.f32.mrb[0].mxu0
        %v977 = vadd.f32 0.0, %v976
        %v978 = vpop.f32.mrb[0].mxu0
        %979 = vmatprep.mubr.bf16.mxu0 0
        %980 = vmatmul.mubr.bf16.gmra.mrb[0].mxu0 %v886
        %v981 = vpop.f32.mrb[0].mxu0
        %v982 = vadd.f32 0.0, %v981
        %v983 = vpop.f32.mrb[0].mxu0
        %v984 = vpop.f32.mrb[0].mxu0
        %v985 = vadd.f32 0.0, %v984
        %v986 = vpop.f32.mrb[0].mxu0
        %987 = vdwg.mxu0
        %v988 = vadd.f32 %v709, %v926
        %v989 = vadd.f32 %v712, %v929
        %v990 = vadd.f32 %v717, %v934
        %v991 = vadd.f32 %v720, %v937
        %v992 = vadd.f32 %v725, %v942
        %v993 = vadd.f32 %v728, %v945
        %v994 = vadd.f32 %v733, %v950
        %v995 = vadd.f32 %v736, %v953
        %v996 = vadd.f32 %v741, %v958
        %v997 = vadd.f32 %v744, %v961
        %v998 = vadd.f32 %v749, %v966
        %v999 = vadd.f32 %v752, %v969
        %v1000 = vadd.f32 %v757, %v974
        %v1001 = vadd.f32 %v760, %v977
        %v1002 = vadd.f32 %v765, %v982
        %v1003 = vadd.f32 %v768, %v985
        %s1004 = scalar_lea.vmem %s219, 6
        %v1005 = vld [vmem:[%s1004] sm:$0x3]
        %v1008 = vunpack.c.l.b16 %v253
        %v1009 = vunpack.c.l.b16 %v254
        %v1010 = vpack.c.b16 %v1009, %v1008
        %v1012 = vsel %vm481, %v1010, 0
        %v1015 = vsel %vm506, %v1005, 0
        %1017 = vmatprep.subr.bf16.mxu0 0
        %1018 = vmatpush1.bf16.msra.mxu0 %v1015
        %1019 = vmatprep.subr.bf16.mxu0 0
        %1020 = vmatpush1.bf16.msra.mxu0 0
        %1021 = vmatprep.subr.bf16.mxu0 0
        %1022 = vmatpush1.bf16.msra.mxu0 0
        %1023 = vmatprep.subr.bf16.mxu0 0
        %1024 = vmatpush1.bf16.msra.mxu0 0
        %1025 = vmatprep.subr.bf16.mxu0 0
        %1026 = vmatpush1.bf16.msra.mxu0 0
        %1027 = vmatprep.subr.bf16.mxu0 0
        %1028 = vmatpush1.bf16.msra.mxu0 0
        %1029 = vmatprep.subr.bf16.mxu0 0
        %1030 = vmatpush1.bf16.msra.mxu0 0
        %1031 = vmatprep.subr.bf16.mxu0 0
        %1032 = vmatpush1.bf16.msra.mxu0 0
        %1033 = vmatprep.subr.bf16.mxu0 0
        %1034 = vmatpush1.bf16.msra.mxu0 0
        %1035 = vmatprep.subr.bf16.mxu0 0
        %1036 = vmatpush1.bf16.msra.mxu0 0
        %1037 = vmatprep.subr.bf16.mxu0 0
        %1038 = vmatpush1.bf16.msra.mxu0 0
        %1039 = vmatprep.subr.bf16.mxu0 0
        %1040 = vmatpush1.bf16.msra.mxu0 0
        %1041 = vmatprep.subr.bf16.mxu0 0
        %1042 = vmatpush1.bf16.msra.mxu0 0
        %1043 = vmatprep.subr.bf16.mxu0 0
        %1044 = vmatpush1.bf16.msra.mxu0 0
        %1045 = vmatprep.subr.bf16.mxu0 0
        %1046 = vmatpush1.bf16.msra.mxu0 0
        %1047 = vmatprep.subr.bf16.mxu0 0
        %1048 = vmatpush1.bf16.msra.mxu0 0
        %1049 = vmatprep.mubr.bf16.mxu0 0
        %1050 = vmatmul.mubr.bf16.gmra.mrb[0].mxu0 %v651
        %v1051 = vpop.f32.mrb[0].mxu0
        %v1052 = vadd.f32 0.0, %v1051
        %v1053 = vpop.f32.mrb[0].mxu0
        %v1054 = vpop.f32.mrb[0].mxu0
        %v1055 = vadd.f32 0.0, %v1054
        %v1056 = vpop.f32.mrb[0].mxu0
        %1057 = vmatprep.mubr.bf16.mxu0 0
        %1058 = vmatmul.mubr.bf16.gmra.mrb[0].mxu0 %v654
        %v1059 = vpop.f32.mrb[0].mxu0
        %v1060 = vadd.f32 0.0, %v1059
        %v1061 = vpop.f32.mrb[0].mxu0
        %v1062 = vpop.f32.mrb[0].mxu0
        %v1063 = vadd.f32 0.0, %v1062
        %v1064 = vpop.f32.mrb[0].mxu0
        %1065 = vmatprep.mubr.bf16.mxu0 0
        %1066 = vmatmul.mubr.bf16.gmra.mrb[0].mxu0 %v657
        %v1067 = vpop.f32.mrb[0].mxu0
        %v1068 = vadd.f32 0.0, %v1067
        %v1069 = vpop.f32.mrb[0].mxu0
        %v1070 = vpop.f32.mrb[0].mxu0
        %v1071 = vadd.f32 0.0, %v1070
        %v1072 = vpop.f32.mrb[0].mxu0
        %1073 = vmatprep.mubr.bf16.mxu0 0
        %1074 = vmatmul.mubr.bf16.gmra.mrb[0].mxu0 %v660
        %v1075 = vpop.f32.mrb[0].mxu0
        %v1076 = vadd.f32 0.0, %v1075
        %v1077 = vpop.f32.mrb[0].mxu0
        %v1078 = vpop.f32.mrb[0].mxu0
        %v1079 = vadd.f32 0.0, %v1078
        %v1080 = vpop.f32.mrb[0].mxu0
        %1081 = vmatprep.mubr.bf16.mxu0 0
        %1082 = vmatmul.mubr.bf16.gmra.mrb[0].mxu0 %v663
        %v1083 = vpop.f32.mrb[0].mxu0
        %v1084 = vadd.f32 0.0, %v1083
        %v1085 = vpop.f32.mrb[0].mxu0
        %v1086 = vpop.f32.mrb[0].mxu0
        %v1087 = vadd.f32 0.0, %v1086
        %v1088 = vpop.f32.mrb[0].mxu0
        %1089 = vmatprep.mubr.bf16.mxu0 0
        %1090 = vmatmul.mubr.bf16.gmra.mrb[0].mxu0 %v666
        %v1091 = vpop.f32.mrb[0].mxu0
        %v1092 = vadd.f32 0.0, %v1091
        %v1093 = vpop.f32.mrb[0].mxu0
        %v1094 = vpop.f32.mrb[0].mxu0
        %v1095 = vadd.f32 0.0, %v1094
        %v1096 = vpop.f32.mrb[0].mxu0
        %1097 = vmatprep.mubr.bf16.mxu0 0
        %1098 = vmatmul.mubr.bf16.gmra.mrb[0].mxu0 %v669
        %v1099 = vpop.f32.mrb[0].mxu0
        %v1100 = vadd.f32 0.0, %v1099
        %v1101 = vpop.f32.mrb[0].mxu0
        %v1102 = vpop.f32.mrb[0].mxu0
        %v1103 = vadd.f32 0.0, %v1102
        %v1104 = vpop.f32.mrb[0].mxu0
        %1105 = vmatprep.mubr.bf16.mxu0 0
        %1106 = vmatmul.mubr.bf16.gmra.mrb[0].mxu0 %v1012
        %v1107 = vpop.f32.mrb[0].mxu0
        %v1108 = vadd.f32 0.0, %v1107
        %v1109 = vpop.f32.mrb[0].mxu0
        %v1110 = vpop.f32.mrb[0].mxu0
        %v1111 = vadd.f32 0.0, %v1110
        %v1112 = vpop.f32.mrb[0].mxu0
        %1113 = vdwg.mxu0
        %v1114 = vadd.f32 %v988, %v1052
        %v1115 = vadd.f32 %v989, %v1055
        %v1116 = vadd.f32 %v990, %v1060
        %v1117 = vadd.f32 %v991, %v1063
        %v1118 = vadd.f32 %v992, %v1068
        %v1119 = vadd.f32 %v993, %v1071
        %v1120 = vadd.f32 %v994, %v1076
        %v1121 = vadd.f32 %v995, %v1079
        %v1122 = vadd.f32 %v996, %v1084
        %v1123 = vadd.f32 %v997, %v1087
        %v1124 = vadd.f32 %v998, %v1092
        %v1125 = vadd.f32 %v999, %v1095
        %v1126 = vadd.f32 %v1000, %v1100
        %v1127 = vadd.f32 %v1001, %v1103
        %v1128 = vadd.f32 %v1002, %v1108
        %v1129 = vadd.f32 %v1003, %v1111
        %v1131 = vshrl.u32 %v253, 16
        %v1133 = vrot.slane %v1131, 4
        %v1134 = vshll.u32 %v253, 16
        %v1136 = vrot.slane %v1134, 5
        %v1137 = vor.u32 %v1133, %v1136
        %v1138 = vrot.slane %v1137, 4
        %v1140 = vshll.u32 %v254, 16
        %v1142 = vrot.slane %v1140, 5
        %v1143 = vsel %vm262, %v1138, %v1142
        %v1144 = vshrl.u32 %v254, 16
        %v1146 = vrot.slane %v1144, 4
        %v1147 = vor.u32 %v1146, %v1142
        %v1148 = vrot.slane %v1147, 4
        %v1150 = vshll.u32 %v255, 16
        %v1152 = vrot.slane %v1150, 5
        %v1153 = vsel %vm262, %v1148, %v1152
        %s1154 = scalar_lea.vmem %s219, 8
        %v1155 = vld [vmem:[%s1154] sm:$0x3]
        %v1156 = vunpack.c.l.b16 %v1143
        %v1157 = vunpack.c.l.b16 %v1153
        %v1158 = vpack.c.b16 %v1157, %v1156
        %v1160 = vsel %vm481, %v1158, 0
        %v1163 = vsel %vm506, %v1155, 0
        %1165 = vmatprep.subr.bf16.mxu0 0
        %1166 = vmatpush1.bf16.msra.mxu0 %v1163
        %1167 = vmatprep.subr.bf16.mxu0 0
        %1168 = vmatpush1.bf16.msra.mxu0 0
        %1169 = vmatprep.subr.bf16.mxu0 0
        %1170 = vmatpush1.bf16.msra.mxu0 0
        %1171 = vmatprep.subr.bf16.mxu0 0
        %1172 = vmatpush1.bf16.msra.mxu0 0
        %1173 = vmatprep.subr.bf16.mxu0 0
        %1174 = vmatpush1.bf16.msra.mxu0 0
        %1175 = vmatprep.subr.bf16.mxu0 0
        %1176 = vmatpush1.bf16.msra.mxu0 0
        %1177 = vmatprep.subr.bf16.mxu0 0
        %1178 = vmatpush1.bf16.msra.mxu0 0
        %1179 = vmatprep.subr.bf16.mxu0 0
        %1180 = vmatpush1.bf16.msra.mxu0 0
        %1181 = vmatprep.subr.bf16.mxu0 0
        %1182 = vmatpush1.bf16.msra.mxu0 0
        %1183 = vmatprep.subr.bf16.mxu0 0
        %1184 = vmatpush1.bf16.msra.mxu0 0
        %1185 = vmatprep.subr.bf16.mxu0 0
        %1186 = vmatpush1.bf16.msra.mxu0 0
        %1187 = vmatprep.subr.bf16.mxu0 0
        %1188 = vmatpush1.bf16.msra.mxu0 0
        %1189 = vmatprep.subr.bf16.mxu0 0
        %1190 = vmatpush1.bf16.msra.mxu0 0
        %1191 = vmatprep.subr.bf16.mxu0 0
        %1192 = vmatpush1.bf16.msra.mxu0 0
        %1193 = vmatprep.subr.bf16.mxu0 0
        %1194 = vmatpush1.bf16.msra.mxu0 0
        %1195 = vmatprep.subr.bf16.mxu0 0
        %1196 = vmatpush1.bf16.msra.mxu0 0
        %1197 = vmatprep.mubr.bf16.mxu0 0
        %1198 = vmatmul.mubr.bf16.gmra.mrb[0].mxu0 %v486
        %v1199 = vpop.f32.mrb[0].mxu0
        %v1200 = vadd.f32 0.0, %v1199
        %v1201 = vpop.f32.mrb[0].mxu0
        %v1202 = vpop.f32.mrb[0].mxu0
        %v1203 = vadd.f32 0.0, %v1202
        %v1204 = vpop.f32.mrb[0].mxu0
        %1205 = vmatprep.mubr.bf16.mxu0 0
        %1206 = vmatmul.mubr.bf16.gmra.mrb[0].mxu0 %v489
        %v1207 = vpop.f32.mrb[0].mxu0
        %v1208 = vadd.f32 0.0, %v1207
        %v1209 = vpop.f32.mrb[0].mxu0
        %v1210 = vpop.f32.mrb[0].mxu0
        %v1211 = vadd.f32 0.0, %v1210
        %v1212 = vpop.f32.mrb[0].mxu0
        %1213 = vmatprep.mubr.bf16.mxu0 0
        %1214 = vmatmul.mubr.bf16.gmra.mrb[0].mxu0 %v492
        %v1215 = vpop.f32.mrb[0].mxu0
        %v1216 = vadd.f32 0.0, %v1215
        %v1217 = vpop.f32.mrb[0].mxu0
        %v1218 = vpop.f32.mrb[0].mxu0
        %v1219 = vadd.f32 0.0, %v1218
        %v1220 = vpop.f32.mrb[0].mxu0
        %1221 = vmatprep.mubr.bf16.mxu0 0
        %1222 = vmatmul.mubr.bf16.gmra.mrb[0].mxu0 %v495
        %v1223 = vpop.f32.mrb[0].mxu0
        %v1224 = vadd.f32 0.0, %v1223
        %v1225 = vpop.f32.mrb[0].mxu0
        %v1226 = vpop.f32.mrb[0].mxu0
        %v1227 = vadd.f32 0.0, %v1226
        %v1228 = vpop.f32.mrb[0].mxu0
        %1229 = vmatprep.mubr.bf16.mxu0 0
        %1230 = vmatmul.mubr.bf16.gmra.mrb[0].mxu0 %v498
        %v1231 = vpop.f32.mrb[0].mxu0
        %v1232 = vadd.f32 0.0, %v1231
        %v1233 = vpop.f32.mrb[0].mxu0
        %v1234 = vpop.f32.mrb[0].mxu0
        %v1235 = vadd.f32 0.0, %v1234
        %v1236 = vpop.f32.mrb[0].mxu0
        %1237 = vmatprep.mubr.bf16.mxu0 0
        %1238 = vmatmul.mubr.bf16.gmra.mrb[0].mxu0 %v501
        %v1239 = vpop.f32.mrb[0].mxu0
        %v1240 = vadd.f32 0.0, %v1239
        %v1241 = vpop.f32.mrb[0].mxu0
        %v1242 = vpop.f32.mrb[0].mxu0
        %v1243 = vadd.f32 0.0, %v1242
        %v1244 = vpop.f32.mrb[0].mxu0
        %1245 = vmatprep.mubr.bf16.mxu0 0
        %1246 = vmatmul.mubr.bf16.gmra.mrb[0].mxu0 %v504
        %v1247 = vpop.f32.mrb[0].mxu0
        %v1248 = vadd.f32 0.0, %v1247
        %v1249 = vpop.f32.mrb[0].mxu0
        %v1250 = vpop.f32.mrb[0].mxu0
        %v1251 = vadd.f32 0.0, %v1250
        %v1252 = vpop.f32.mrb[0].mxu0
        %1253 = vmatprep.mubr.bf16.mxu0 0
        %1254 = vmatmul.mubr.bf16.gmra.mrb[0].mxu0 %v1160
        %v1255 = vpop.f32.mrb[0].mxu0
        %v1256 = vadd.f32 0.0, %v1255
        %v1257 = vpop.f32.mrb[0].mxu0
        %v1258 = vpop.f32.mrb[0].mxu0
        %v1259 = vadd.f32 0.0, %v1258
        %v1260 = vpop.f32.mrb[0].mxu0
        %1261 = vdwg.mxu0
        %v1262 = vadd.f32 %v1114, %v1200
        %v1263 = vadd.f32 %v1115, %v1203
        %v1264 = vadd.f32 %v1116, %v1208
        %v1265 = vadd.f32 %v1117, %v1211
        %v1266 = vadd.f32 %v1118, %v1216
        %v1267 = vadd.f32 %v1119, %v1219
        %v1268 = vadd.f32 %v1120, %v1224
        %v1269 = vadd.f32 %v1121, %v1227
        %v1270 = vadd.f32 %v1122, %v1232
        %v1271 = vadd.f32 %v1123, %v1235
        %v1272 = vadd.f32 %v1124, %v1240
        %v1273 = vadd.f32 %v1125, %v1243
        %v1274 = vadd.f32 %v1126, %v1248
        %v1275 = vadd.f32 %v1127, %v1251
        %v1276 = vadd.f32 %v1128, %v1256
        %v1277 = vadd.f32 %v1129, %v1259
        %v1279 = vrot.slane %v253, 5
        %v1280 = vrot.slane %v1279, 4
        %v1281 = vrot.slane %v254, 5
        %v1282 = vsel %vm781, %v1280, %v1281
        %v1283 = vrot.slane %v1281, 4
        %v1284 = vrot.slane %v255, 5
        %v1285 = vsel %vm781, %v1283, %v1284
        %s1286 = scalar_lea.vmem %s219, 10
        %v1287 = vld [vmem:[%s1286] sm:$0x3]
        %v1288 = vunpack.c.l.b16 %v1282
        %v1289 = vunpack.c.l.b16 %v1285
        %v1290 = vpack.c.b16 %v1289, %v1288
        %v1292 = vsel %vm481, %v1290, 0
        %v1295 = vsel %vm506, %v1287, 0
        %1297 = vmatprep.subr.bf16.mxu0 0
        %1298 = vmatpush1.bf16.msra.mxu0 %v1295
        %1299 = vmatprep.subr.bf16.mxu0 0
        %1300 = vmatpush1.bf16.msra.mxu0 0
        %1301 = vmatprep.subr.bf16.mxu0 0
        %1302 = vmatpush1.bf16.msra.mxu0 0
        %1303 = vmatprep.subr.bf16.mxu0 0
        %1304 = vmatpush1.bf16.msra.mxu0 0
        %1305 = vmatprep.subr.bf16.mxu0 0
        %1306 = vmatpush1.bf16.msra.mxu0 0
        %1307 = vmatprep.subr.bf16.mxu0 0
        %1308 = vmatpush1.bf16.msra.mxu0 0
        %1309 = vmatprep.subr.bf16.mxu0 0
        %1310 = vmatpush1.bf16.msra.mxu0 0
        %1311 = vmatprep.subr.bf16.mxu0 0
        %1312 = vmatpush1.bf16.msra.mxu0 0
        %1313 = vmatprep.subr.bf16.mxu0 0
        %1314 = vmatpush1.bf16.msra.mxu0 0
        %1315 = vmatprep.subr.bf16.mxu0 0
        %1316 = vmatpush1.bf16.msra.mxu0 0
        %1317 = vmatprep.subr.bf16.mxu0 0
        %1318 = vmatpush1.bf16.msra.mxu0 0
        %1319 = vmatprep.subr.bf16.mxu0 0
        %1320 = vmatpush1.bf16.msra.mxu0 0
        %1321 = vmatprep.subr.bf16.mxu0 0
        %1322 = vmatpush1.bf16.msra.mxu0 0
        %1323 = vmatprep.subr.bf16.mxu0 0
        %1324 = vmatpush1.bf16.msra.mxu0 0
        %1325 = vmatprep.subr.bf16.mxu0 0
        %1326 = vmatpush1.bf16.msra.mxu0 0
        %1327 = vmatprep.subr.bf16.mxu0 0
        %1328 = vmatpush1.bf16.msra.mxu0 0
        %1329 = vmatprep.mubr.bf16.mxu0 0
        %1330 = vmatmul.mubr.bf16.gmra.mrb[0].mxu0 %v868
        %v1331 = vpop.f32.mrb[0].mxu0
        %v1332 = vadd.f32 0.0, %v1331
        %v1333 = vpop.f32.mrb[0].mxu0
        %v1334 = vpop.f32.mrb[0].mxu0
        %v1335 = vadd.f32 0.0, %v1334
        %v1336 = vpop.f32.mrb[0].mxu0
        %1337 = vmatprep.mubr.bf16.mxu0 0
        %1338 = vmatmul.mubr.bf16.gmra.mrb[0].mxu0 %v871
        %v1339 = vpop.f32.mrb[0].mxu0
        %v1340 = vadd.f32 0.0, %v1339
        %v1341 = vpop.f32.mrb[0].mxu0
        %v1342 = vpop.f32.mrb[0].mxu0
        %v1343 = vadd.f32 0.0, %v1342
        %v1344 = vpop.f32.mrb[0].mxu0
        %1345 = vmatprep.mubr.bf16.mxu0 0
        %1346 = vmatmul.mubr.bf16.gmra.mrb[0].mxu0 %v874
        %v1347 = vpop.f32.mrb[0].mxu0
        %v1348 = vadd.f32 0.0, %v1347
        %v1349 = vpop.f32.mrb[0].mxu0
        %v1350 = vpop.f32.mrb[0].mxu0
        %v1351 = vadd.f32 0.0, %v1350
        %v1352 = vpop.f32.mrb[0].mxu0
        %1353 = vmatprep.mubr.bf16.mxu0 0
        %1354 = vmatmul.mubr.bf16.gmra.mrb[0].mxu0 %v877
        %v1355 = vpop.f32.mrb[0].mxu0
        %v1356 = vadd.f32 0.0, %v1355
        %v1357 = vpop.f32.mrb[0].mxu0
        %v1358 = vpop.f32.mrb[0].mxu0
        %v1359 = vadd.f32 0.0, %v1358
        %v1360 = vpop.f32.mrb[0].mxu0
        %1361 = vmatprep.mubr.bf16.mxu0 0
        %1362 = vmatmul.mubr.bf16.gmra.mrb[0].mxu0 %v880
        %v1363 = vpop.f32.mrb[0].mxu0
        %v1364 = vadd.f32 0.0, %v1363
        %v1365 = vpop.f32.mrb[0].mxu0
        %v1366 = vpop.f32.mrb[0].mxu0
        %v1367 = vadd.f32 0.0, %v1366
        %v1368 = vpop.f32.mrb[0].mxu0
        %1369 = vmatprep.mubr.bf16.mxu0 0
        %1370 = vmatmul.mubr.bf16.gmra.mrb[0].mxu0 %v883
        %v1371 = vpop.f32.mrb[0].mxu0
        %v1372 = vadd.f32 0.0, %v1371
        %v1373 = vpop.f32.mrb[0].mxu0
        %v1374 = vpop.f32.mrb[0].mxu0
        %v1375 = vadd.f32 0.0, %v1374
        %v1376 = vpop.f32.mrb[0].mxu0
        %1377 = vmatprep.mubr.bf16.mxu0 0
        %1378 = vmatmul.mubr.bf16.gmra.mrb[0].mxu0 %v886
        %v1379 = vpop.f32.mrb[0].mxu0
        %v1380 = vadd.f32 0.0, %v1379
        %v1381 = vpop.f32.mrb[0].mxu0
        %v1382 = vpop.f32.mrb[0].mxu0
        %v1383 = vadd.f32 0.0, %v1382
        %v1384 = vpop.f32.mrb[0].mxu0
        %1385 = vmatprep.mubr.bf16.mxu0 0
        %1386 = vmatmul.mubr.bf16.gmra.mrb[0].mxu0 %v1292
        %v1387 = vpop.f32.mrb[0].mxu0
        %v1388 = vadd.f32 0.0, %v1387
        %v1389 = vpop.f32.mrb[0].mxu0
        %v1390 = vpop.f32.mrb[0].mxu0
        %v1391 = vadd.f32 0.0, %v1390
        %v1392 = vpop.f32.mrb[0].mxu0
        %1393 = vdwg.mxu0
        %v1394 = vadd.f32 %v1262, %v1332
        %v1395 = vadd.f32 %v1263, %v1335
        %v1396 = vadd.f32 %v1264, %v1340
        %v1397 = vadd.f32 %v1265, %v1343
        %v1398 = vadd.f32 %v1266, %v1348
        %v1399 = vadd.f32 %v1267, %v1351
        %v1400 = vadd.f32 %v1268, %v1356
        %v1401 = vadd.f32 %v1269, %v1359
        %v1402 = vadd.f32 %v1270, %v1364
        %v1403 = vadd.f32 %v1271, %v1367
        %v1404 = vadd.f32 %v1272, %v1372
        %v1405 = vadd.f32 %v1273, %v1375
        %v1406 = vadd.f32 %v1274, %v1380
        %v1407 = vadd.f32 %v1275, %v1383
        %v1408 = vadd.f32 %v1276, %v1388
        %v1409 = vadd.f32 %v1277, %v1391
        %s1410 = scalar_lea.vmem %s219, 12
        %v1411 = vld [vmem:[%s1410] sm:$0x3]
        %v1414 = vunpack.c.l.b16 %v256
        %v1415 = vunpack.c.l.b16 %v257
        %v1416 = vpack.c.b16 %v1415, %v1414
        %v1418 = vsel %vm481, %v1416, 0
        %v1421 = vsel %vm506, %v1411, 0
        %1423 = vmatprep.subr.bf16.mxu0 0
        %1424 = vmatpush1.bf16.msra.mxu0 %v1421
        %1425 = vmatprep.subr.bf16.mxu0 0
        %1426 = vmatpush1.bf16.msra.mxu0 0
        %1427 = vmatprep.subr.bf16.mxu0 0
        %1428 = vmatpush1.bf16.msra.mxu0 0
        %1429 = vmatprep.subr.bf16.mxu0 0
        %1430 = vmatpush1.bf16.msra.mxu0 0
        %1431 = vmatprep.subr.bf16.mxu0 0
        %1432 = vmatpush1.bf16.msra.mxu0 0
        %1433 = vmatprep.subr.bf16.mxu0 0
        %1434 = vmatpush1.bf16.msra.mxu0 0
        %1435 = vmatprep.subr.bf16.mxu0 0
        %1436 = vmatpush1.bf16.msra.mxu0 0
        %1437 = vmatprep.subr.bf16.mxu0 0
        %1438 = vmatpush1.bf16.msra.mxu0 0
        %1439 = vmatprep.subr.bf16.mxu0 0
        %1440 = vmatpush1.bf16.msra.mxu0 0
        %1441 = vmatprep.subr.bf16.mxu0 0
        %1442 = vmatpush1.bf16.msra.mxu0 0
        %1443 = vmatprep.subr.bf16.mxu0 0
        %1444 = vmatpush1.bf16.msra.mxu0 0
        %1445 = vmatprep.subr.bf16.mxu0 0
        %1446 = vmatpush1.bf16.msra.mxu0 0
        %1447 = vmatprep.subr.bf16.mxu0 0
        %1448 = vmatpush1.bf16.msra.mxu0 0
        %1449 = vmatprep.subr.bf16.mxu0 0
        %1450 = vmatpush1.bf16.msra.mxu0 0
        %1451 = vmatprep.subr.bf16.mxu0 0
        %1452 = vmatpush1.bf16.msra.mxu0 0
        %1453 = vmatprep.subr.bf16.mxu0 0
        %1454 = vmatpush1.bf16.msra.mxu0 0
        %1455 = vmatprep.mubr.bf16.mxu0 0
        %1456 = vmatmul.mubr.bf16.gmra.mrb[0].mxu0 %v654
        %v1457 = vpop.f32.mrb[0].mxu0
        %v1458 = vadd.f32 0.0, %v1457
        %v1459 = vpop.f32.mrb[0].mxu0
        %v1460 = vpop.f32.mrb[0].mxu0
        %v1461 = vadd.f32 0.0, %v1460
        %v1462 = vpop.f32.mrb[0].mxu0
        %1463 = vmatprep.mubr.bf16.mxu0 0
        %1464 = vmatmul.mubr.bf16.gmra.mrb[0].mxu0 %v657
        %v1465 = vpop.f32.mrb[0].mxu0
        %v1466 = vadd.f32 0.0, %v1465
        %v1467 = vpop.f32.mrb[0].mxu0
        %v1468 = vpop.f32.mrb[0].mxu0
        %v1469 = vadd.f32 0.0, %v1468
        %v1470 = vpop.f32.mrb[0].mxu0
        %1471 = vmatprep.mubr.bf16.mxu0 0
        %1472 = vmatmul.mubr.bf16.gmra.mrb[0].mxu0 %v660
        %v1473 = vpop.f32.mrb[0].mxu0
        %v1474 = vadd.f32 0.0, %v1473
        %v1475 = vpop.f32.mrb[0].mxu0
        %v1476 = vpop.f32.mrb[0].mxu0
        %v1477 = vadd.f32 0.0, %v1476
        %v1478 = vpop.f32.mrb[0].mxu0
        %1479 = vmatprep.mubr.bf16.mxu0 0
        %1480 = vmatmul.mubr.bf16.gmra.mrb[0].mxu0 %v663
        %v1481 = vpop.f32.mrb[0].mxu0
        %v1482 = vadd.f32 0.0, %v1481
        %v1483 = vpop.f32.mrb[0].mxu0
        %v1484 = vpop.f32.mrb[0].mxu0
        %v1485 = vadd.f32 0.0, %v1484
        %v1486 = vpop.f32.mrb[0].mxu0
        %1487 = vmatprep.mubr.bf16.mxu0 0
        %1488 = vmatmul.mubr.bf16.gmra.mrb[0].mxu0 %v666
        %v1489 = vpop.f32.mrb[0].mxu0
        %v1490 = vadd.f32 0.0, %v1489
        %v1491 = vpop.f32.mrb[0].mxu0
        %v1492 = vpop.f32.mrb[0].mxu0
        %v1493 = vadd.f32 0.0, %v1492
        %v1494 = vpop.f32.mrb[0].mxu0
        %1495 = vmatprep.mubr.bf16.mxu0 0
        %1496 = vmatmul.mubr.bf16.gmra.mrb[0].mxu0 %v669
        %v1497 = vpop.f32.mrb[0].mxu0
        %v1498 = vadd.f32 0.0, %v1497
        %v1499 = vpop.f32.mrb[0].mxu0
        %v1500 = vpop.f32.mrb[0].mxu0
        %v1501 = vadd.f32 0.0, %v1500
        %v1502 = vpop.f32.mrb[0].mxu0
        %1503 = vmatprep.mubr.bf16.mxu0 0
        %1504 = vmatmul.mubr.bf16.gmra.mrb[0].mxu0 %v1012
        %v1505 = vpop.f32.mrb[0].mxu0
        %v1506 = vadd.f32 0.0, %v1505
        %v1507 = vpop.f32.mrb[0].mxu0
        %v1508 = vpop.f32.mrb[0].mxu0
        %v1509 = vadd.f32 0.0, %v1508
        %v1510 = vpop.f32.mrb[0].mxu0
        %1511 = vmatprep.mubr.bf16.mxu0 0
        %1512 = vmatmul.mubr.bf16.gmra.mrb[0].mxu0 %v1418
        %v1513 = vpop.f32.mrb[0].mxu0
        %v1514 = vadd.f32 0.0, %v1513
        %v1515 = vpop.f32.mrb[0].mxu0
        %v1516 = vpop.f32.mrb[0].mxu0
        %v1517 = vadd.f32 0.0, %v1516
        %v1518 = vpop.f32.mrb[0].mxu0
        %1519 = vdwg.mxu0
        %v1520 = vadd.f32 %v1394, %v1458
        %v1521 = vadd.f32 %v1395, %v1461
        %v1522 = vadd.f32 %v1396, %v1466
        %v1523 = vadd.f32 %v1397, %v1469
        %v1524 = vadd.f32 %v1398, %v1474
        %v1525 = vadd.f32 %v1399, %v1477
        %v1526 = vadd.f32 %v1400, %v1482
        %v1527 = vadd.f32 %v1401, %v1485
        %v1528 = vadd.f32 %v1402, %v1490
        %v1529 = vadd.f32 %v1403, %v1493
        %v1530 = vadd.f32 %v1404, %v1498
        %v1531 = vadd.f32 %v1405, %v1501
        %v1532 = vadd.f32 %v1406, %v1506
        %v1533 = vadd.f32 %v1407, %v1509
        %v1534 = vadd.f32 %v1408, %v1514
        %v1535 = vadd.f32 %v1409, %v1517
        %v1537 = vshrl.u32 %v256, 16
        %v1539 = vrot.slane %v1537, 4
        %v1540 = vshll.u32 %v256, 16
        %v1542 = vrot.slane %v1540, 5
        %v1543 = vor.u32 %v1539, %v1542
        %v1544 = vrot.slane %v1543, 4
        %v1546 = vshll.u32 %v257, 16
        %v1548 = vrot.slane %v1546, 5
        %v1549 = vsel %vm262, %v1544, %v1548
        %v1550 = vshrl.u32 %v257, 16
        %v1552 = vrot.slane %v1550, 4
        %v1553 = vor.u32 %v1552, %v1548
        %v1554 = vrot.slane %v1553, 4
        %v1556 = vshll.u32 %v258, 16
        %v1558 = vrot.slane %v1556, 5
        %v1559 = vsel %vm262, %v1554, %v1558
        %s1560 = scalar_lea.vmem %s219, 14
        %v1561 = vld [vmem:[%s1560] sm:$0x3]
        %v1562 = vunpack.c.l.b16 %v1549
        %v1563 = vunpack.c.l.b16 %v1559
        %v1564 = vpack.c.b16 %v1563, %v1562
        %v1566 = vsel %vm481, %v1564, 0
        %v1569 = vsel %vm506, %v1561, 0
        %1571 = vmatprep.subr.bf16.mxu0 0
        %1572 = vmatpush1.bf16.msra.mxu0 %v1569
        %1573 = vmatprep.subr.bf16.mxu0 0
        %1574 = vmatpush1.bf16.msra.mxu0 0
        %1575 = vmatprep.subr.bf16.mxu0 0
        %1576 = vmatpush1.bf16.msra.mxu0 0
        %1577 = vmatprep.subr.bf16.mxu0 0
        %1578 = vmatpush1.bf16.msra.mxu0 0
        %1579 = vmatprep.subr.bf16.mxu0 0
        %1580 = vmatpush1.bf16.msra.mxu0 0
        %1581 = vmatprep.subr.bf16.mxu0 0
        %1582 = vmatpush1.bf16.msra.mxu0 0
        %1583 = vmatprep.subr.bf16.mxu0 0
        %1584 = vmatpush1.bf16.msra.mxu0 0
        %1585 = vmatprep.subr.bf16.mxu0 0
        %1586 = vmatpush1.bf16.msra.mxu0 0
        %1587 = vmatprep.subr.bf16.mxu0 0
        %1588 = vmatpush1.bf16.msra.mxu0 0
        %1589 = vmatprep.subr.bf16.mxu0 0
        %1590 = vmatpush1.bf16.msra.mxu0 0
        %1591 = vmatprep.subr.bf16.mxu0 0
        %1592 = vmatpush1.bf16.msra.mxu0 0
        %1593 = vmatprep.subr.bf16.mxu0 0
        %1594 = vmatpush1.bf16.msra.mxu0 0
        %1595 = vmatprep.subr.bf16.mxu0 0
        %1596 = vmatpush1.bf16.msra.mxu0 0
        %1597 = vmatprep.subr.bf16.mxu0 0
        %1598 = vmatpush1.bf16.msra.mxu0 0
        %1599 = vmatprep.subr.bf16.mxu0 0
        %1600 = vmatpush1.bf16.msra.mxu0 0
        %1601 = vmatprep.subr.bf16.mxu0 0
        %1602 = vmatpush1.bf16.msra.mxu0 0
        %1603 = vmatprep.mubr.bf16.mxu0 0
        %1604 = vmatmul.mubr.bf16.gmra.mrb[0].mxu0 %v489
        %v1605 = vpop.f32.mrb[0].mxu0
        %v1606 = vadd.f32 0.0, %v1605
        %v1607 = vpop.f32.mrb[0].mxu0
        %v1608 = vpop.f32.mrb[0].mxu0
        %v1609 = vadd.f32 0.0, %v1608
        %v1610 = vpop.f32.mrb[0].mxu0
        %1611 = vmatprep.mubr.bf16.mxu0 0
        %1612 = vmatmul.mubr.bf16.gmra.mrb[0].mxu0 %v492
        %v1613 = vpop.f32.mrb[0].mxu0
        %v1614 = vadd.f32 0.0, %v1613
        %v1615 = vpop.f32.mrb[0].mxu0
        %v1616 = vpop.f32.mrb[0].mxu0
        %v1617 = vadd.f32 0.0, %v1616
        %v1618 = vpop.f32.mrb[0].mxu0
        %1619 = vmatprep.mubr.bf16.mxu0 0
        %1620 = vmatmul.mubr.bf16.gmra.mrb[0].mxu0 %v495
        %v1621 = vpop.f32.mrb[0].mxu0
        %v1622 = vadd.f32 0.0, %v1621
        %v1623 = vpop.f32.mrb[0].mxu0
        %v1624 = vpop.f32.mrb[0].mxu0
        %v1625 = vadd.f32 0.0, %v1624
        %v1626 = vpop.f32.mrb[0].mxu0
        %1627 = vmatprep.mubr.bf16.mxu0 0
        %1628 = vmatmul.mubr.bf16.gmra.mrb[0].mxu0 %v498
        %v1629 = vpop.f32.mrb[0].mxu0
        %v1630 = vadd.f32 0.0, %v1629
        %v1631 = vpop.f32.mrb[0].mxu0
        %v1632 = vpop.f32.mrb[0].mxu0
        %v1633 = vadd.f32 0.0, %v1632
        %v1634 = vpop.f32.mrb[0].mxu0
        %1635 = vmatprep.mubr.bf16.mxu0 0
        %1636 = vmatmul.mubr.bf16.gmra.mrb[0].mxu0 %v501
        %v1637 = vpop.f32.mrb[0].mxu0
        %v1638 = vadd.f32 0.0, %v1637
        %v1639 = vpop.f32.mrb[0].mxu0
        %v1640 = vpop.f32.mrb[0].mxu0
        %v1641 = vadd.f32 0.0, %v1640
        %v1642 = vpop.f32.mrb[0].mxu0
        %1643 = vmatprep.mubr.bf16.mxu0 0
        %1644 = vmatmul.mubr.bf16.gmra.mrb[0].mxu0 %v504
        %v1645 = vpop.f32.mrb[0].mxu0
        %v1646 = vadd.f32 0.0, %v1645
        %v1647 = vpop.f32.mrb[0].mxu0
        %v1648 = vpop.f32.mrb[0].mxu0
        %v1649 = vadd.f32 0.0, %v1648
        %v1650 = vpop.f32.mrb[0].mxu0
        %1651 = vmatprep.mubr.bf16.mxu0 0
        %1652 = vmatmul.mubr.bf16.gmra.mrb[0].mxu0 %v1160
        %v1653 = vpop.f32.mrb[0].mxu0
        %v1654 = vadd.f32 0.0, %v1653
        %v1655 = vpop.f32.mrb[0].mxu0
        %v1656 = vpop.f32.mrb[0].mxu0
        %v1657 = vadd.f32 0.0, %v1656
        %v1658 = vpop.f32.mrb[0].mxu0
        %1659 = vmatprep.mubr.bf16.mxu0 0
        %1660 = vmatmul.mubr.bf16.gmra.mrb[0].mxu0 %v1566
        %v1661 = vpop.f32.mrb[0].mxu0
        %v1662 = vadd.f32 0.0, %v1661
        %v1663 = vpop.f32.mrb[0].mxu0
        %v1664 = vpop.f32.mrb[0].mxu0
        %v1665 = vadd.f32 0.0, %v1664
        %v1666 = vpop.f32.mrb[0].mxu0
        %1667 = vdwg.mxu0
        %v1668 = vadd.f32 %v1520, %v1606
        %v1669 = vadd.f32 %v1521, %v1609
        %v1670 = vadd.f32 %v1522, %v1614
        %v1671 = vadd.f32 %v1523, %v1617
        %v1672 = vadd.f32 %v1524, %v1622
        %v1673 = vadd.f32 %v1525, %v1625
        %v1674 = vadd.f32 %v1526, %v1630
        %v1675 = vadd.f32 %v1527, %v1633
        %v1676 = vadd.f32 %v1528, %v1638
        %v1677 = vadd.f32 %v1529, %v1641
        %v1678 = vadd.f32 %v1530, %v1646
        %v1679 = vadd.f32 %v1531, %v1649
        %v1680 = vadd.f32 %v1532, %v1654
        %v1681 = vadd.f32 %v1533, %v1657
        %v1682 = vadd.f32 %v1534, %v1662
        %v1683 = vadd.f32 %v1535, %v1665
        %v1685 = vrot.slane %v256, 5
        %v1686 = vrot.slane %v1685, 4
        %v1687 = vrot.slane %v257, 5
        %v1688 = vsel %vm781, %v1686, %v1687
        %v1689 = vrot.slane %v1687, 4
        %v1690 = vrot.slane %v258, 5
        %v1691 = vsel %vm781, %v1689, %v1690
        %s1692 = scalar_lea.vmem %s219, 16
        %v1693 = vld [vmem:[%s1692] sm:$0x3]
        %v1694 = vunpack.c.l.b16 %v1688
        %v1695 = vunpack.c.l.b16 %v1691
        %v1696 = vpack.c.b16 %v1695, %v1694
        %v1698 = vsel %vm481, %v1696, 0
        %v1701 = vsel %vm506, %v1693, 0
        %1703 = vmatprep.subr.bf16.mxu0 0
        %1704 = vmatpush1.bf16.msra.mxu0 %v1701
        %1705 = vmatprep.subr.bf16.mxu0 0
        %1706 = vmatpush1.bf16.msra.mxu0 0
        %1707 = vmatprep.subr.bf16.mxu0 0
        %1708 = vmatpush1.bf16.msra.mxu0 0
        %1709 = vmatprep.subr.bf16.mxu0 0
        %1710 = vmatpush1.bf16.msra.mxu0 0
        %1711 = vmatprep.subr.bf16.mxu0 0
        %1712 = vmatpush1.bf16.msra.mxu0 0
        %1713 = vmatprep.subr.bf16.mxu0 0
        %1714 = vmatpush1.bf16.msra.mxu0 0
        %1715 = vmatprep.subr.bf16.mxu0 0
        %1716 = vmatpush1.bf16.msra.mxu0 0
        %1717 = vmatprep.subr.bf16.mxu0 0
        %1718 = vmatpush1.bf16.msra.mxu0 0
        %1719 = vmatprep.subr.bf16.mxu0 0
        %1720 = vmatpush1.bf16.msra.mxu0 0
        %1721 = vmatprep.subr.bf16.mxu0 0
        %1722 = vmatpush1.bf16.msra.mxu0 0
        %1723 = vmatprep.subr.bf16.mxu0 0
        %1724 = vmatpush1.bf16.msra.mxu0 0
        %1725 = vmatprep.subr.bf16.mxu0 0
        %1726 = vmatpush1.bf16.msra.mxu0 0
        %1727 = vmatprep.subr.bf16.mxu0 0
        %1728 = vmatpush1.bf16.msra.mxu0 0
        %1729 = vmatprep.subr.bf16.mxu0 0
        %1730 = vmatpush1.bf16.msra.mxu0 0
        %1731 = vmatprep.subr.bf16.mxu0 0
        %1732 = vmatpush1.bf16.msra.mxu0 0
        %1733 = vmatprep.subr.bf16.mxu0 0
        %1734 = vmatpush1.bf16.msra.mxu0 0
        %1735 = vmatprep.mubr.bf16.mxu0 0
        %1736 = vmatmul.mubr.bf16.gmra.mrb[0].mxu0 %v871
        %v1737 = vpop.f32.mrb[0].mxu0
        %v1738 = vadd.f32 0.0, %v1737
        %v1739 = vpop.f32.mrb[0].mxu0
        %v1740 = vpop.f32.mrb[0].mxu0
        %v1741 = vadd.f32 0.0, %v1740
        %v1742 = vpop.f32.mrb[0].mxu0
        %1743 = vmatprep.mubr.bf16.mxu0 0
        %1744 = vmatmul.mubr.bf16.gmra.mrb[0].mxu0 %v874
        %v1745 = vpop.f32.mrb[0].mxu0
        %v1746 = vadd.f32 0.0, %v1745
        %v1747 = vpop.f32.mrb[0].mxu0
        %v1748 = vpop.f32.mrb[0].mxu0
        %v1749 = vadd.f32 0.0, %v1748
        %v1750 = vpop.f32.mrb[0].mxu0
        %1751 = vmatprep.mubr.bf16.mxu0 0
        %1752 = vmatmul.mubr.bf16.gmra.mrb[0].mxu0 %v877
        %v1753 = vpop.f32.mrb[0].mxu0
        %v1754 = vadd.f32 0.0, %v1753
        %v1755 = vpop.f32.mrb[0].mxu0
        %v1756 = vpop.f32.mrb[0].mxu0
        %v1757 = vadd.f32 0.0, %v1756
        %v1758 = vpop.f32.mrb[0].mxu0
        %1759 = vmatprep.mubr.bf16.mxu0 0
        %1760 = vmatmul.mubr.bf16.gmra.mrb[0].mxu0 %v880
        %v1761 = vpop.f32.mrb[0].mxu0
        %v1762 = vadd.f32 0.0, %v1761
        %v1763 = vpop.f32.mrb[0].mxu0
        %v1764 = vpop.f32.mrb[0].mxu0
        %v1765 = vadd.f32 0.0, %v1764
        %v1766 = vpop.f32.mrb[0].mxu0
        %1767 = vmatprep.mubr.bf16.mxu0 0
        %1768 = vmatmul.mubr.bf16.gmra.mrb[0].mxu0 %v883
        %v1769 = vpop.f32.mrb[0].mxu0
        %v1770 = vadd.f32 0.0, %v1769
        %v1771 = vpop.f32.mrb[0].mxu0
        %v1772 = vpop.f32.mrb[0].mxu0
        %v1773 = vadd.f32 0.0, %v1772
        %v1774 = vpop.f32.mrb[0].mxu0
        %1775 = vmatprep.mubr.bf16.mxu0 0
        %1776 = vmatmul.mubr.bf16.gmra.mrb[0].mxu0 %v886
        %v1777 = vpop.f32.mrb[0].mxu0
        %v1778 = vadd.f32 0.0, %v1777
        %v1779 = vpop.f32.mrb[0].mxu0
        %v1780 = vpop.f32.mrb[0].mxu0
        %v1781 = vadd.f32 0.0, %v1780
        %v1782 = vpop.f32.mrb[0].mxu0
        %1783 = vmatprep.mubr.bf16.mxu0 0
        %1784 = vmatmul.mubr.bf16.gmra.mrb[0].mxu0 %v1292
        %v1785 = vpop.f32.mrb[0].mxu0
        %v1786 = vadd.f32 0.0, %v1785
        %v1787 = vpop.f32.mrb[0].mxu0
        %v1788 = vpop.f32.mrb[0].mxu0
        %v1789 = vadd.f32 0.0, %v1788
        %v1790 = vpop.f32.mrb[0].mxu0
        %1791 = vmatprep.mubr.bf16.mxu0 0
        %1792 = vmatmul.mubr.bf16.gmra.mrb[0].mxu0 %v1698
        %v1793 = vpop.f32.mrb[0].mxu0
        %v1794 = vadd.f32 0.0, %v1793
        %v1795 = vpop.f32.mrb[0].mxu0
        %v1796 = vpop.f32.mrb[0].mxu0
        %v1797 = vadd.f32 0.0, %v1796
        %v1798 = vpop.f32.mrb[0].mxu0
        %1799 = vdwg.mxu0
        %v1800 = vadd.f32 %v1668, %v1738
        %v1801 = vadd.f32 %v1669, %v1741
        %v1802 = vadd.f32 %v1670, %v1746
        %v1803 = vadd.f32 %v1671, %v1749
        %v1804 = vadd.f32 %v1672, %v1754
        %v1805 = vadd.f32 %v1673, %v1757
        %v1806 = vadd.f32 %v1674, %v1762
        %v1807 = vadd.f32 %v1675, %v1765
        %v1808 = vadd.f32 %v1676, %v1770
        %v1809 = vadd.f32 %v1677, %v1773
        %v1810 = vadd.f32 %v1678, %v1778
        %v1811 = vadd.f32 %v1679, %v1781
        %v1812 = vadd.f32 %v1680, %v1786
        %v1813 = vadd.f32 %v1681, %v1789
        %v1814 = vadd.f32 %v1682, %v1794
        %v1815 = vadd.f32 %v1683, %v1797
        %v1816 = vld [vmem:[%s222] sm:$0x1]
        %v1818 = vlaneseq
        %v1819 = vshrl.u32 %v1818, 7
        %v1820 = vsub.s32 0, %v1819
        %v1821 = vrot.slane %v1816, %v1820
        %v1823 = vadd.f32 %v1800, %v1821
        %v1824 = vadd.f32 %v1801, %v1821
        %v1825 = vadd.f32 %v1802, %v1821
        %v1826 = vadd.f32 %v1803, %v1821
        %v1827 = vadd.f32 %v1804, %v1821
        %v1828 = vadd.f32 %v1805, %v1821
        %v1829 = vadd.f32 %v1806, %v1821
        %v1830 = vadd.f32 %v1807, %v1821
        %v1831 = vadd.f32 %v1808, %v1821
        %v1832 = vadd.f32 %v1809, %v1821
        %v1833 = vadd.f32 %v1810, %v1821
        %v1834 = vadd.f32 %v1811, %v1821
        %v1835 = vadd.f32 %v1812, %v1821
        %v1836 = vadd.f32 %v1813, %v1821
        %v1837 = vadd.f32 %v1814, %v1821
        %v1838 = vadd.f32 %v1815, %v1821
        %v1839 = vmax.f32 %v1823, 0.0
        %v1840 = vmax.f32 %v1824, 0.0
        %v1841 = vmax.f32 %v1825, 0.0
        %v1842 = vmax.f32 %v1826, 0.0
        %v1843 = vmax.f32 %v1827, 0.0
        %v1844 = vmax.f32 %v1828, 0.0
        %v1845 = vmax.f32 %v1829, 0.0
        %v1846 = vmax.f32 %v1830, 0.0
        %v1847 = vmax.f32 %v1831, 0.0
        %v1848 = vmax.f32 %v1832, 0.0
        %v1849 = vmax.f32 %v1833, 0.0
        %v1850 = vmax.f32 %v1834, 0.0
        %v1851 = vmax.f32 %v1835, 0.0
        %v1852 = vmax.f32 %v1836, 0.0
        %v1853 = vmax.f32 %v1837, 0.0
        %v1854 = vmax.f32 %v1838, 0.0
        %v1855 = vpack.c.bf16 %v1840, %v1839
        %v1856 = vpack.c.bf16 %v1842, %v1841
        %v1857 = vpack.c.bf16 %v1844, %v1843
        %v1858 = vpack.c.bf16 %v1846, %v1845
        %v1859 = vpack.c.bf16 %v1848, %v1847
        %v1860 = vpack.c.bf16 %v1850, %v1849
        %v1861 = vpack.c.bf16 %v1852, %v1851
        %v1862 = vpack.c.bf16 %v1854, %v1853
        %v1871 = vunpack.c.l.b16 %v1855
        %v1872 = vunpack.c.h.b16 %v1855
        %v1873 = vunpack.c.l.b16 %v1856
        %v1874 = vunpack.c.h.b16 %v1856
        %v1875 = vunpack.c.l.b16 %v1857
        %v1876 = vunpack.c.h.b16 %v1857
        %v1877 = vunpack.c.l.b16 %v1858
        %v1878 = vunpack.c.h.b16 %v1858
        %v1879 = vunpack.c.l.b16 %v1859
        %v1880 = vunpack.c.h.b16 %v1859
        %v1881 = vunpack.c.l.b16 %v1860
        %v1882 = vunpack.c.h.b16 %v1860
        %v1883 = vunpack.c.l.b16 %v1861
        %v1884 = vunpack.c.h.b16 %v1861
        %v1885 = vunpack.c.l.b16 %v1862
        %v1886 = vunpack.c.h.b16 %v1862
        %v1887 = vpack.c.b16 %v1871, %v1871
        %v1888 = vpack.c.b16 %v1872, %v1872
        %v1889 = vpack.c.b16 %v1873, %v1873
        %v1890 = vpack.c.b16 %v1874, %v1874
        %v1891 = vpack.c.b16 %v1875, %v1875
        %v1892 = vpack.c.b16 %v1876, %v1876
        %v1893 = vpack.c.b16 %v1877, %v1877
        %v1894 = vpack.c.b16 %v1878, %v1878
        %v1895 = vpack.c.b16 %v1879, %v1879
        %v1896 = vpack.c.b16 %v1880, %v1880
        %v1897 = vpack.c.b16 %v1881, %v1881
        %v1898 = vpack.c.b16 %v1882, %v1882
        %v1899 = vpack.c.b16 %v1883, %v1883
        %v1900 = vpack.c.b16 %v1884, %v1884
        %v1901 = vpack.c.b16 %v1885, %v1885
        %v1902 = vpack.c.b16 %v1886, %v1886
        %1919 = vst [vmem:[%s210] sm:$0xf] %v1887
        %1920 = vst [vmem:[%s210 + $0x4] sm:$0xf] %v1888
        %1921 = vst [vmem:[%s210 + $0x8] sm:$0xf] %v1889
        %1922 = vst [vmem:[%s210 + $0xc] sm:$0xf] %v1890
        %1923 = vst [vmem:[%s210 + $0x10] sm:$0xf] %v1891
        %1924 = vst [vmem:[%s210 + $0x14] sm:$0xf] %v1892
        %1925 = vst [vmem:[%s210 + $0x18] sm:$0xf] %v1893
        %1926 = vst [vmem:[%s210 + $0x1c] sm:$0xf] %v1894
        %1927 = vst [vmem:[%s210 + $0x20] sm:$0xf] %v1895
        %1928 = vst [vmem:[%s210 + $0x24] sm:$0xf] %v1896
        %1929 = vst [vmem:[%s210 + $0x28] sm:$0xf] %v1897
        %1930 = vst [vmem:[%s210 + $0x2c] sm:$0xf] %v1898
        %1931 = vst [vmem:[%s210 + $0x30] sm:$0xf] %v1899
        %1932 = vst [vmem:[%s210 + $0x34] sm:$0xf] %v1900
        %1933 = vst [vmem:[%s210 + $0x38] sm:$0xf] %v1901
        %1934 = vst [vmem:[%s210 + $0x3c] sm:$0xf] %v1902
        %s1935 = sand.u32 %s126, 1
        %s1936 = scalar_lea.sflag [#allocation3], %s1935
        %s1937 = sand.u32 %s126, 1
        %s1938 = smul.addr %s1937, 64
        %s1939 = scalar_lea.vmem [#allocation2], %s1938
        // Predicated region
        $region33: #{tpu_custom_call.1} parent=31 // pred_check
          %p1940 = pneg %p136
        $region34: #{tpu_custom_call.1} parent=31 // pred_check_branch
          %1942 = sbr.rel (%p1940) target = $region36
        $region35: #{tpu_custom_call.1} parent=31 // pred_region
          %s1943 = smul.u32 8, %s24
          %s1945 = ssub.s32 1024, 1024
          %1946 = vsyncadd %s1936, %s1945
          %s1947 = smul.addr %s1943, 2
          %s1948 = sadd.s32 %s23, %s1947
          %s1949 = smul.addr %s22, 32
          %s1950 = sadd.s32 %s1948, %s1949
          %s1951 = smul.addr %s1950, 64
          %s1952 = scalar_lea.hbm %s3, %s1951
          %s1953 = sshll.u32 %s1939, 4
          %s1954 = int_to_ptr.vmem [resolvable:$true] %s1953
          %1959 = dma.vmem_to_hbm [thread:$0]  %s1954, 1024, %s1952, %s1936, 64, 64, 4
        $region36: #{tpu_custom_call.1} parent=31 // pred_fallthru
          _
      $region32: #{tpu_custom_call.1} parent=5 // pred_fallthru
        _
      %p1960 = scmp.le.s32.totalorder 2, %s12
      // Predicated region
      $region37: #{tpu_custom_call.1} parent=5 // pred_check
        %p1961 = pneg %p1960
      $region38: #{tpu_custom_call.1} parent=5 // pred_check_branch
        %1963 = sbr.rel (%p1961) target = $region40
      $region39: #{tpu_custom_call.1} parent=5 // pred_region
        %s1964 = ssub.s32 %s12, 2
        // Predicated region
        $region41: #{tpu_custom_call.1} parent=39 // pred_check
          %p1965 = pneg %p142
        $region42: #{tpu_custom_call.1} parent=39 // pred_check_branch
          %1967 = sbr.rel (%p1965) target = $region44
        $region43: #{tpu_custom_call.1} parent=39 // pred_region
          %s1968 = sand.u32 %s127, 1
          %s1969 = scalar_lea.sflag [#allocation3], %s1968
          %s1970 = sand.u32 %s127, 1
          %s1971 = smul.addr %s1970, 64
          %s1972 = scalar_lea.vmem [#allocation2], %s1971
          %1973 = dma.done %s1969, 1024
        $region44: #{tpu_custom_call.1} parent=39 // pred_fallthru
          _
      $region40: #{tpu_custom_call.1} parent=5 // pred_fallthru
        _
    $region6: #{tpu_custom_call.1} parent=1 // loop_footer
      %s16 = sadd.s32 1, %s12
    $region7: #{tpu_custom_call.1} parent=1 // loop_footer_branch
      %11 = sbr.rel target = $region3
    $region8: #{tpu_custom_call.1} parent=1 // loop_exit
      _
    %1974 = vsyncpa [#allocation3], 1
    %s1975 = scalar_lea.sflag [#allocation3], 1
    %1976 = vsyncpa %s1975, 1

</llo_original>
